<compile_context>
chip_gen: v5e
topology: v5e:2x2
jax: 0.10.0
libtpu: 0.0.40
codegen_flags: <defaults>
</compile_context>

<pallas_src>
import functools
import math

import jax
import jax.numpy as jnp
from jax import lax
from jax.experimental import pallas as pl
from jax.experimental.pallas import tpu as pltpu


def _dhsfnn_kernel(x_ref, w1_ref, beta_ref, alpha1_ref, w2_ref, b2_ref,
                   alpha2_ref, out_ref,
                   d_ref, mem1_ref, spk1_ref, mem2_ref, spk2_ref,
                   *, t_chunk, b_tile, hidden, branch, out_size, o_pad, vth,
                   unroll):
    """One (batch_tile, time_chunk) grid step.

    Layout: batch in lanes, features/classes in sublanes.
      x_ref    : (t_chunk, d_pad+1, b_tile)   last feature column is all-ones (bias)
      w1_ref   : (branch*hidden, d_pad+1)     bias folded into the last column
      beta_ref : (branch*hidden, 1)           sigmoid(tau_n), branch-major rows
      alpha1   : (hidden, 1)                  sigmoid(tau_m1)
      w2_ref   : (o_pad, hidden)              rows >= out_size are zero
      b2_ref   : (o_pad, 1)
      alpha2   : (o_pad, 1)
      out_ref  : (t_chunk, o_pad, b_tile)     log_softmax(mem2) per step
      scratch  : recurrent state carried across time chunks.
    """
    tc = pl.program_id(1)
    bh = branch * hidden

    # set_neuron_state(): zero the recurrent state at the first time chunk of
    # this batch tile (time is the fastest-varying grid axis).
    @pl.when(tc == 0)
    def _init():
        d_ref[...] = jnp.zeros_like(d_ref)
        mem1_ref[...] = jnp.zeros_like(mem1_ref)
        spk1_ref[...] = jnp.zeros_like(spk1_ref)
        mem2_ref[...] = jnp.zeros_like(mem2_ref)
        spk2_ref[...] = jnp.zeros_like(spk2_ref)

    # Loop-invariant operands, hoisted once (broadcasts are not CSE'd by JAX).
    w1 = w1_ref[...]                                             # (bh, d_aug)
    w2 = w2_ref[...]                                             # (o_pad, hidden)
    beta = jnp.broadcast_to(beta_ref[...], (bh, b_tile))
    alpha1 = jnp.broadcast_to(alpha1_ref[...], (hidden, b_tile))
    alpha2 = jnp.broadcast_to(alpha2_ref[...], (o_pad, b_tile))
    b2 = jnp.broadcast_to(b2_ref[...], (o_pad, b_tile))

    def step(tt, carry):
        d, mem1, spk1, mem2, spk2 = carry
        x_t = x_ref[tt]                                          # (d_aug, b_tile)

        # layer-1 projection (bias folded in via the ones column): tiny-K MXU
        # dot, state-independent, so it overlaps the VALU chain under unroll.
        cur1 = jnp.dot(w1, x_t, preferred_element_type=jnp.float32)  # (bh, B)

        # dendritic low-pass, lerp form  == beta*d + (1-beta)*cur1
        d = cur1 + (d - cur1) * beta

        # branch sum: rows are branch-major, so sum sublane groups of `hidden`.
        l_in = d[0:hidden, :]
        for k in range(1, branch):
            l_in = l_in + d[k * hidden:(k + 1) * hidden, :]

        # layer-1 membrane (soft reset), lerp form
        m1r = mem1 - spk1 * vth
        mem1 = l_in + (m1r - l_in) * alpha1
        spk1 = (mem1 > vth).astype(jnp.float32)

        # layer-2 projection + membrane (soft reset)
        cur2 = jnp.dot(w2, spk1, preferred_element_type=jnp.float32) + b2
        m2r = mem2 - spk2 * vth
        mem2 = cur2 + (m2r - cur2) * alpha2
        spk2 = (mem2 > vth).astype(jnp.float32)

        out_ref[tt] = mem2                                       # stage logits
        return d, mem1, spk1, mem2, spk2

    carry0 = (d_ref[...], mem1_ref[...], spk1_ref[...],
              mem2_ref[...], spk2_ref[...])
    d, mem1, spk1, mem2, spk2 = lax.fori_loop(
        0, t_chunk, step, carry0, unroll=unroll)
    d_ref[...] = d
    mem1_ref[...] = mem1
    spk1_ref[...] = spk1
    mem2_ref[...] = mem2
    spk2_ref[...] = spk2

    # log_softmax over the real classes (sublane axis) for the whole chunk,
    # one dense read-modify-write of the output block.  Padded class rows are
    # excluded from the max/sum and sliced off in the wrapper.
    logits = out_ref[...]                                        # (Tc, o_pad, B)
    valid = logits[:, :out_size, :]
    m = jnp.max(valid, axis=1, keepdims=True)
    lse = m + jnp.log(jnp.sum(jnp.exp(valid - m), axis=1, keepdims=True))
    out_ref[...] = logits - lse


def dhsfnn_forward(x, params, *, hidden, branch, vth=0.5,
                   t_chunk=None, b_tile=None):
    """x: (B, T, D) float32.  Returns (B, O, T) like the PyTorch module."""
    B, T, D = x.shape
    w1, b1, tau_n, tau_m1, w2, b2, tau_m2 = params
    bh, d_pad = w1.shape
    out_size = w2.shape[0]
    assert bh == branch * hidden
    f32 = jnp.float32

    # Time-invariant decay factors, computed once in the wrapper.
    beta = jax.nn.sigmoid(tau_n.astype(f32)).reshape(bh, 1)
    alpha1 = jax.nn.sigmoid(tau_m1.astype(f32)).reshape(hidden, 1)
    alpha2 = jax.nn.sigmoid(tau_m2.astype(f32)).reshape(out_size, 1)

    # Fold bias1 into W1 via an appended ones input column.
    w1aug = jnp.concatenate(
        [w1.astype(f32), b1.astype(f32).reshape(bh, 1)], axis=1)   # (bh, d_pad+1)
    d_aug = d_pad + 1

    # Pad classes to a sublane multiple; padded rows (zero weights/bias) never
    # spike and are excluded from the log-softmax.
    o_pad = ((out_size + 7) // 8) * 8
    w2p = jnp.zeros((o_pad, hidden), f32).at[:out_size].set(w2.astype(f32))
    b2p = jnp.zeros((o_pad, 1), f32).at[:out_size, 0].set(
        b2.astype(f32).reshape(-1))
    a2p = jnp.zeros((o_pad, 1), f32).at[:out_size].set(alpha2)

    # Batch lives in the lane dim: a single tile when the padded batch fits in
    # 128 lanes, otherwise 128-wide tiles (unmasked stores, and >=2 'parallel'
    # grid steps on v7x megacore when B > 128).
    b_pad8 = max(8, ((B + 7) // 8) * 8)
    if b_tile is None:
        b_tile = b_pad8 if b_pad8 <= 128 else 128
    assert b_tile % 8 == 0
    if b_tile % 128 == 0:
        b_padded = ((b_pad8 + b_tile - 1) // b_tile) * b_tile
    else:
        assert b_tile >= b_pad8, "b_tile < padded batch requires b_tile % 128 == 0"
        b_padded = b_tile

    # Time chunking: one grid step handles t_chunk timesteps.
    if t_chunk is None:
        t_chunk = T if T <= 128 else 128
    t_padded = ((T + t_chunk - 1) // t_chunk) * t_chunk
    unroll = max(1, math.gcd(t_chunk, 8))      # integer partial unroll

    # x -> (T, d_pad(+ones), B): features on sublanes, batch on lanes.
    x_tm = jnp.transpose(x.astype(f32), (1, 2, 0))                 # (T, D, B)
    x_tm = jnp.pad(x_tm, ((0, t_padded - T), (0, d_pad - D), (0, b_padded - B)))
    ones_col = jnp.ones((t_padded, 1, b_padded), f32)
    x_tm = jnp.concatenate([x_tm, ones_col], axis=1)               # (T, d_aug, B)

    n_bt = b_padded // b_tile
    n_tc = t_padded // t_chunk

    kernel = functools.partial(
        _dhsfnn_kernel, t_chunk=t_chunk, b_tile=b_tile, hidden=hidden,
        branch=branch, out_size=out_size, o_pad=o_pad, vth=float(vth),
        unroll=unroll)

    grid_spec = pltpu.PrefetchScalarGridSpec(
        num_scalar_prefetch=0,
        grid=(n_bt, n_tc),
        in_specs=[
            pl.BlockSpec((t_chunk, d_aug, b_tile), lambda bt, tc: (tc, 0, bt)),
            pl.BlockSpec((bh, d_aug), lambda bt, tc: (0, 0)),       # W1 | b1
            pl.BlockSpec((bh, 1), lambda bt, tc: (0, 0)),           # sigmoid(tau_n)
            pl.BlockSpec((hidden, 1), lambda bt, tc: (0, 0)),       # sigmoid(tau_m1)
            pl.BlockSpec((o_pad, hidden), lambda bt, tc: (0, 0)),   # W2 (padded)
            pl.BlockSpec((o_pad, 1), lambda bt, tc: (0, 0)),        # b2 (padded)
            pl.BlockSpec((o_pad, 1), lambda bt, tc: (0, 0)),        # sigmoid(tau_m2)
        ],
        out_specs=pl.BlockSpec((t_chunk, o_pad, b_tile),
                               lambda bt, tc: (tc, 0, bt)),
        scratch_shapes=[
            pltpu.VMEM((bh, b_tile), f32),       # dendritic currents d
            pltpu.VMEM((hidden, b_tile), f32),   # mem1
            pltpu.VMEM((hidden, b_tile), f32),   # spike1
            pltpu.VMEM((o_pad, b_tile), f32),    # mem2
            pltpu.VMEM((o_pad, b_tile), f32),    # spike2
        ],
    )

    out_tm = pl.pallas_call(
        kernel,
        out_shape=jax.ShapeDtypeStruct((t_padded, o_pad, b_padded), f32),
        grid_spec=grid_spec,
        compiler_params=pltpu.CompilerParams(
            # batch tiles are independent (megacore on v7x); time is recurrent.
            # Working set is ~1-2 MiB so no vmem_limit_bytes raise is needed on
            # any of v5e/v6e/v7x.
            dimension_semantics=("parallel", "arbitrary")),
    )(x_tm, w1aug, beta, alpha1, w2p, b2p, a2p)

    out_tm = out_tm[:T, :out_size, :B]          # drop time/class/batch padding
    return jnp.transpose(out_tm, (2, 1, 0))     # (B, O, T) == permute(1, 2, 0)


def dhsfnn_reference(x, params, *, hidden, branch, vth=0.5):
    """Pure-JAX reference of the PyTorch forward (same branch-major params)."""
    w1, b1, tau_n, tau_m1, w2, b2, tau_m2 = params
    B, T, D = x.shape
    bh, d_pad = w1.shape
    O = w2.shape[0]
    f32 = jnp.float32
    hp = jax.lax.Precision.HIGHEST
    beta = jax.nn.sigmoid(tau_n.astype(f32)).reshape(1, bh)
    alpha1 = jax.nn.sigmoid(tau_m1.astype(f32)).reshape(1, hidden)
    alpha2 = jax.nn.sigmoid(tau_m2.astype(f32)).reshape(1, O)
    xp = jnp.concatenate(
        [x.astype(f32), jnp.zeros((B, T, d_pad - D), f32)], axis=-1)

    def step(carry, x_t):
        d, mem1, spk1, mem2, spk2 = carry
        cur1 = jnp.dot(x_t, w1.T, precision=hp) + b1.reshape(1, bh)
        d = beta * d + (1.0 - beta) * cur1
        l_in = d.reshape(B, branch, hidden).sum(axis=1)
        mem1 = (mem1 - spk1 * vth) * alpha1 + (1.0 - alpha1) * l_in
        spk1 = (mem1 > vth).astype(f32)
        cur2 = jnp.dot(spk1, w2.T, precision=hp) + b2.reshape(1, O)
        mem2 = (mem2 - spk2 * vth) * alpha2 + (1.0 - alpha2) * cur2
        spk2 = (mem2 > vth).astype(f32)
        return (d, mem1, spk1, mem2, spk2), jax.nn.log_softmax(mem2, axis=1)

    init = (jnp.zeros((B, bh), f32), jnp.zeros((B, hidden), f32),
            jnp.zeros((B, hidden), f32), jnp.zeros((B, O), f32),
            jnp.zeros((B, O), f32))
    _, outs = lax.scan(step, init, jnp.transpose(xp, (1, 0, 2)))
    return jnp.transpose(outs, (1, 2, 0))        # (B, O, T)


def init_params(key, input_size, hidden, output_size, branch,
                low_n=0.0, high_n=0.0, low_m=0.0, high_m=4.0):
    """Synthetic parameters matching the module's structure.

    Layer-1 rows are stored branch-major (row = k*hidden + i for neuron i,
    branch k), with the dendritic connectivity mask (create_mask / apply_mask)
    applied at init.  DHSFNN passes high_n = low_n, so tau_n is the constant
    low_n; tau_m ~ U(low_m, high_m).
    """
    pad = (input_size // branch * branch + branch - input_size) % branch
    d_pad = input_size + pad
    bh = branch * hidden
    ks = jax.random.split(key, 8)

    bound1 = 1.0 / (d_pad ** 0.5)
    w1 = jax.random.uniform(ks[0], (bh, d_pad), jnp.float32, -bound1, bound1)
    b1 = jax.random.uniform(ks[1], (bh,), jnp.float32, -bound1, bound1)

    # create_mask(): each neuron randomly assigns its (padded) inputs to branches
    seg = d_pad // branch
    mask = jnp.zeros((branch, hidden, d_pad), jnp.float32)
    mask_keys = jax.random.split(ks[7], hidden)
    for i in range(hidden):
        perm = jax.random.permutation(mask_keys[i], d_pad)
        for j in range(branch):
            mask = mask.at[j, i, perm[j * seg:(j + 1) * seg]].set(1.0)
    w1 = w1 * mask.reshape(bh, d_pad)

    tau_n = low_n + (high_n - low_n) * jax.random.uniform(ks[2], (bh,), jnp.float32)
    tau_m1 = low_m + (high_m - low_m) * jax.random.uniform(ks[3], (hidden,), jnp.float32)

    bound2 = 1.0 / (hidden ** 0.5)
    w2 = jax.random.uniform(ks[4], (output_size, hidden), jnp.float32, -bound2, bound2)
    b2 = jax.random.uniform(ks[5], (output_size,), jnp.float32, -bound2, bound2)
    tau_m2 = low_m + (high_m - low_m) * jax.random.uniform(ks[6], (output_size,), jnp.float32)

    return (w1, b1, tau_n, tau_m1, w2, b2, tau_m2)


if __name__ == "__main__":
    # small shapes consistent with the ECG model: batch=2, seq=8, in=4,
    # hidden (cfg_fc[0])=32, out=6 classes, branch=4
    B, T, D, H, O, BR = 2, 8, 4, 32, 6, 4

    key = jax.random.PRNGKey(0)
    kx, kp = jax.random.split(key)
    x = jax.random.uniform(kx, (B, T, D), jnp.float32)
    params = init_params(kp, D, H, O, BR)

    out = dhsfnn_forward(x, params, hidden=H, branch=BR, vth=0.5)
    out = jax.block_until_ready(out)
    assert out.shape == (B, O, T), out.shape
    assert bool(jnp.all(jnp.isfinite(out)))
    # log_softmax sanity: class probabilities sum to 1 at every (batch, time)
    probs = jnp.sum(jnp.exp(out), axis=1)
    assert bool(jnp.all(jnp.abs(probs - 1.0) < 1e-4))
    # match the pure-JAX reference of the module's forward
    ref = dhsfnn_reference(x, params, hidden=H, branch=BR, vth=0.5)
    assert bool(jnp.all(jnp.abs(out - ref) < 5e-4)), float(jnp.max(jnp.abs(out - ref)))
    print("KERNEL_OK")
</pallas_src>

<mosaic_0001>
module attributes {stable_mosaic.version = 11 : i64} {
  func.func @_dhsfnn_kernel(%arg0: i32, %arg1: i32, %arg2: memref<8x5x8xf32, #tpu.memory_space<vmem>>, %arg3: memref<128x5xf32, #tpu.memory_space<vmem>>, %arg4: memref<128x1xf32, #tpu.memory_space<vmem>>, %arg5: memref<32x1xf32, #tpu.memory_space<vmem>>, %arg6: memref<8x32xf32, #tpu.memory_space<vmem>>, %arg7: memref<8x1xf32, #tpu.memory_space<vmem>>, %arg8: memref<8x1xf32, #tpu.memory_space<vmem>>, %arg9: memref<8x8x8xf32, #tpu.memory_space<vmem>>, %arg10: memref<128x8xf32, #tpu.memory_space<vmem>>, %arg11: memref<32x8xf32, #tpu.memory_space<vmem>>, %arg12: memref<32x8xf32, #tpu.memory_space<vmem>>, %arg13: memref<8x8xf32, #tpu.memory_space<vmem>>, %arg14: memref<8x8xf32, #tpu.memory_space<vmem>>) attributes {dimension_semantics = [#tpu.dimension_semantics<parallel>, #tpu.dimension_semantics<arbitrary>], iteration_bounds = array<i64: 1, 1>, scalar_prefetch = 0 : i64, scratch_operands = 5 : i64, tpu.core_type = #tpu.core_type<tc>, window_params = [{transform_indices = @transform_0, window_bounds = array<i64: 8, 5, 8>}, {pipeline_mode = #tpu.pipeline_mode<synchronous>, transform_indices = @transform_1, window_bounds = array<i64: 128, 5>}, {pipeline_mode = #tpu.pipeline_mode<synchronous>, transform_indices = @transform_2, window_bounds = array<i64: 128, 1>}, {pipeline_mode = #tpu.pipeline_mode<synchronous>, transform_indices = @transform_3, window_bounds = array<i64: 32, 1>}, {pipeline_mode = #tpu.pipeline_mode<synchronous>, transform_indices = @transform_4, window_bounds = array<i64: 8, 32>}, {pipeline_mode = #tpu.pipeline_mode<synchronous>, transform_indices = @transform_5, window_bounds = array<i64: 8, 1>}, {pipeline_mode = #tpu.pipeline_mode<synchronous>, transform_indices = @transform_6, window_bounds = array<i64: 8, 1>}, {transform_indices = @transform_7, window_bounds = array<i64: 8, 8, 8>}]} {
    %c0_i32 = arith.constant 0 : i32
    %0 = arith.cmpi eq, %arg1, %c0_i32 : i32
    %1 = arith.extui %0 : i1 to i32
    %c0_i32_0 = arith.constant 0 : i32
    %2 = arith.cmpi ne, %1, %c0_i32_0 : i32
    scf.if %2 {
      %cst_120 = arith.constant 0.000000e+00 : f32
      %361 = vector.broadcast %cst_120 : f32 to vector<128x8xf32>
      %c0_121 = arith.constant 0 : index
      %c0_122 = arith.constant 0 : index
      %362 = vector.load %arg10[%c0_121, %c0_122] : memref<128x8xf32, #tpu.memory_space<vmem>>, vector<128x8xf32>
      tpu.vector_store %arg10[%c0_121, %c0_122], %361 {strides = array<i32>} : memref<128x8xf32, #tpu.memory_space<vmem>>, vector<128x8xf32>,
      %cst_123 = arith.constant 0.000000e+00 : f32
      %363 = vector.broadcast %cst_123 : f32 to vector<32x8xf32>
      %c0_124 = arith.constant 0 : index
      %c0_125 = arith.constant 0 : index
      %364 = vector.load %arg11[%c0_124, %c0_125] : memref<32x8xf32, #tpu.memory_space<vmem>>, vector<32x8xf32>
      tpu.vector_store %arg11[%c0_124, %c0_125], %363 {strides = array<i32>} : memref<32x8xf32, #tpu.memory_space<vmem>>, vector<32x8xf32>,
      %cst_126 = arith.constant 0.000000e+00 : f32
      %365 = vector.broadcast %cst_126 : f32 to vector<32x8xf32>
      %c0_127 = arith.constant 0 : index
      %c0_128 = arith.constant 0 : index
      %366 = vector.load %arg12[%c0_127, %c0_128] : memref<32x8xf32, #tpu.memory_space<vmem>>, vector<32x8xf32>
      tpu.vector_store %arg12[%c0_127, %c0_128], %365 {strides = array<i32>} : memref<32x8xf32, #tpu.memory_space<vmem>>, vector<32x8xf32>,
      %cst_129 = arith.constant 0.000000e+00 : f32
      %367 = vector.broadcast %cst_129 : f32 to vector<8x8xf32>
      %c0_130 = arith.constant 0 : index
      %c0_131 = arith.constant 0 : index
      %368 = vector.load %arg13[%c0_130, %c0_131] : memref<8x8xf32, #tpu.memory_space<vmem>>, vector<8x8xf32>
      tpu.vector_store %arg13[%c0_130, %c0_131], %367 {strides = array<i32>} : memref<8x8xf32, #tpu.memory_space<vmem>>, vector<8x8xf32>,
      %cst_132 = arith.constant 0.000000e+00 : f32
      %369 = vector.broadcast %cst_132 : f32 to vector<8x8xf32>
      %c0_133 = arith.constant 0 : index
      %c0_134 = arith.constant 0 : index
      %370 = vector.load %arg14[%c0_133, %c0_134] : memref<8x8xf32, #tpu.memory_space<vmem>>, vector<8x8xf32>
      tpu.vector_store %arg14[%c0_133, %c0_134], %369 {strides = array<i32>} : memref<8x8xf32, #tpu.memory_space<vmem>>, vector<8x8xf32>,
    } else {
    }
    %c0 = arith.constant 0 : index
    %c0_1 = arith.constant 0 : index
    %3 = vector.load %arg3[%c0, %c0_1] : memref<128x5xf32, #tpu.memory_space<vmem>>, vector<128x5xf32>
    %c0_2 = arith.constant 0 : index
    %c0_3 = arith.constant 0 : index
    %4 = vector.load %arg6[%c0_2, %c0_3] : memref<8x32xf32, #tpu.memory_space<vmem>>, vector<8x32xf32>
    %c0_4 = arith.constant 0 : index
    %c0_5 = arith.constant 0 : index
    %5 = vector.load %arg4[%c0_4, %c0_5] : memref<128x1xf32, #tpu.memory_space<vmem>>, vector<128x1xf32>
    %6 = vector.shape_cast %5 : vector<128x1xf32> to vector<128x1xf32>
    %7 = vector.broadcast %6 : vector<128x1xf32> to vector<128x8xf32>
    %c0_6 = arith.constant 0 : index
    %c0_7 = arith.constant 0 : index
    %8 = vector.load %arg5[%c0_6, %c0_7] : memref<32x1xf32, #tpu.memory_space<vmem>>, vector<32x1xf32>
    %9 = vector.shape_cast %8 : vector<32x1xf32> to vector<32x1xf32>
    %10 = vector.broadcast %9 : vector<32x1xf32> to vector<32x8xf32>
    %c0_8 = arith.constant 0 : index
    %c0_9 = arith.constant 0 : index
    %11 = vector.load %arg8[%c0_8, %c0_9] : memref<8x1xf32, #tpu.memory_space<vmem>>, vector<8x1xf32>
    %12 = vector.shape_cast %11 : vector<8x1xf32> to vector<8x1xf32>
    %13 = vector.broadcast %12 : vector<8x1xf32> to vector<8x8xf32>
    %c0_10 = arith.constant 0 : index
    %c0_11 = arith.constant 0 : index
    %14 = vector.load %arg7[%c0_10, %c0_11] : memref<8x1xf32, #tpu.memory_space<vmem>>, vector<8x1xf32>
    %15 = vector.shape_cast %14 : vector<8x1xf32> to vector<8x1xf32>
    %16 = vector.broadcast %15 : vector<8x1xf32> to vector<8x8xf32>
    %c0_12 = arith.constant 0 : index
    %c0_13 = arith.constant 0 : index
    %17 = vector.load %arg10[%c0_12, %c0_13] : memref<128x8xf32, #tpu.memory_space<vmem>>, vector<128x8xf32>
    %c0_14 = arith.constant 0 : index
    %c0_15 = arith.constant 0 : index
    %18 = vector.load %arg11[%c0_14, %c0_15] : memref<32x8xf32, #tpu.memory_space<vmem>>, vector<32x8xf32>
    %c0_16 = arith.constant 0 : index
    %c0_17 = arith.constant 0 : index
    %19 = vector.load %arg12[%c0_16, %c0_17] : memref<32x8xf32, #tpu.memory_space<vmem>>, vector<32x8xf32>
    %c0_18 = arith.constant 0 : index
    %c0_19 = arith.constant 0 : index
    %20 = vector.load %arg13[%c0_18, %c0_19] : memref<8x8xf32, #tpu.memory_space<vmem>>, vector<8x8xf32>
    %c0_20 = arith.constant 0 : index
    %c0_21 = arith.constant 0 : index
    %21 = vector.load %arg14[%c0_20, %c0_21] : memref<8x8xf32, #tpu.memory_space<vmem>>, vector<8x8xf32>
    %c0_i32_22 = arith.constant 0 : i32
    %22 = arith.index_cast %c0_i32_22 : i32 to index
    %c0_23 = arith.constant 0 : index
    %c0_24 = arith.constant 0 : index
    %23 = vector.load %arg2[%22, %c0_23, %c0_24] : memref<8x5x8xf32, #tpu.memory_space<vmem>>, vector<1x5x8xf32>
    %24 = vector.shape_cast %23 : vector<1x5x8xf32> to vector<5x8xf32>
    %cst = arith.constant dense<0.000000e+00> : vector<128x8xf32>
    %25 = tpu.matmul %3, %24, %cst {dimension_numbers = #tpu.dot_dimension_numbers<[1], [0], [0], [1], [0, 0, 1, 1], [], []>} : vector<128x5xf32>, vector<5x8xf32>, vector<128x8xf32> -> vector<128x8xf32>
    %26 = arith.subf %17, %25 : vector<128x8xf32>
    %27 = arith.mulf %26, %7 : vector<128x8xf32>
    %28 = arith.addf %25, %27 : vector<128x8xf32>
    %29 = vector.extract_strided_slice %28 {offsets = [0, 0], sizes = [32, 8], strides = [1, 1]} : vector<128x8xf32> to vector<32x8xf32>
    %30 = vector.extract_strided_slice %28 {offsets = [32, 0], sizes = [32, 8], strides = [1, 1]} : vector<128x8xf32> to vector<32x8xf32>
    %31 = arith.addf %29, %30 : vector<32x8xf32>
    %32 = vector.extract_strided_slice %28 {offsets = [64, 0], sizes = [32, 8], strides = [1, 1]} : vector<128x8xf32> to vector<32x8xf32>
    %33 = arith.addf %31, %32 : vector<32x8xf32>
    %34 = vector.extract_strided_slice %28 {offsets = [96, 0], sizes = [32, 8], strides = [1, 1]} : vector<128x8xf32> to vector<32x8xf32>
    %35 = arith.addf %33, %34 : vector<32x8xf32>
    %cst_25 = arith.constant 5.000000e-01 : f32
    %36 = vector.broadcast %cst_25 : f32 to vector<32x8xf32>
    %37 = arith.mulf %19, %36 : vector<32x8xf32>
    %38 = arith.subf %18, %37 : vector<32x8xf32>
    %39 = arith.subf %38, %35 : vector<32x8xf32>
    %40 = arith.mulf %39, %10 : vector<32x8xf32>
    %41 = arith.addf %35, %40 : vector<32x8xf32>
    %cst_26 = arith.constant 5.000000e-01 : f32
    %42 = vector.broadcast %cst_26 : f32 to vector<32x8xf32>
    %43 = arith.cmpf ogt, %41, %42 : vector<32x8xf32>
    %44 = arith.extui %43 : vector<32x8xi1> to vector<32x8xi32>
    %45 = arith.sitofp %44 : vector<32x8xi32> to vector<32x8xf32>
    %cst_27 = arith.constant dense<0.000000e+00> : vector<8x8xf32>
    %46 = tpu.matmul %4, %45, %cst_27 {dimension_numbers = #tpu.dot_dimension_numbers<[1], [0], [0], [1], [0, 0, 1, 1], [], []>} : vector<8x32xf32>, vector<32x8xf32>, vector<8x8xf32> -> vector<8x8xf32>
    %47 = arith.addf %46, %16 : vector<8x8xf32>
    %cst_28 = arith.constant 5.000000e-01 : f32
    %48 = vector.broadcast %cst_28 : f32 to vector<8x8xf32>
    %49 = arith.mulf %21, %48 : vector<8x8xf32>
    %50 = arith.subf %20, %49 : vector<8x8xf32>
    %51 = arith.subf %50, %47 : vector<8x8xf32>
    %52 = arith.mulf %51, %13 : vector<8x8xf32>
    %53 = arith.addf %47, %52 : vector<8x8xf32>
    %cst_29 = arith.constant 5.000000e-01 : f32
    %54 = vector.broadcast %cst_29 : f32 to vector<8x8xf32>
    %55 = arith.cmpf ogt, %53, %54 : vector<8x8xf32>
    %56 = arith.extui %55 : vector<8x8xi1> to vector<8x8xi32>
    %57 = arith.sitofp %56 : vector<8x8xi32> to vector<8x8xf32>
    %58 = arith.index_cast %c0_i32_22 : i32 to index
    %c0_30 = arith.constant 0 : index
    %c0_31 = arith.constant 0 : index
    %59 = vector.load %arg9[%58, %c0_30, %c0_31] : memref<8x8x8xf32, #tpu.memory_space<vmem>>, vector<1x8x8xf32>
    %60 = vector.shape_cast %59 : vector<1x8x8xf32> to vector<8x8xf32>
    %61 = vector.shape_cast %53 : vector<8x8xf32> to vector<1x8x8xf32>
    tpu.vector_store %arg9[%58, %c0_30, %c0_31], %61 {strides = array<i32>} : memref<8x8x8xf32, #tpu.memory_space<vmem>>, vector<1x8x8xf32>,
    %c1_i32 = arith.constant 1 : i32
    %62 = arith.index_cast %c1_i32 : i32 to index
    %c0_32 = arith.constant 0 : index
    %c0_33 = arith.constant 0 : index
    %63 = vector.load %arg2[%62, %c0_32, %c0_33] : memref<8x5x8xf32, #tpu.memory_space<vmem>>, vector<1x5x8xf32>
    %64 = vector.shape_cast %63 : vector<1x5x8xf32> to vector<5x8xf32>
    %cst_34 = arith.constant dense<0.000000e+00> : vector<128x8xf32>
    %65 = tpu.matmul %3, %64, %cst_34 {dimension_numbers = #tpu.dot_dimension_numbers<[1], [0], [0], [1], [0, 0, 1, 1], [], []>} : vector<128x5xf32>, vector<5x8xf32>, vector<128x8xf32> -> vector<128x8xf32>
    %66 = arith.subf %28, %65 : vector<128x8xf32>
    %67 = arith.mulf %66, %7 : vector<128x8xf32>
    %68 = arith.addf %65, %67 : vector<128x8xf32>
    %69 = vector.extract_strided_slice %68 {offsets = [0, 0], sizes = [32, 8], strides = [1, 1]} : vector<128x8xf32> to vector<32x8xf32>
    %70 = vector.extract_strided_slice %68 {offsets = [32, 0], sizes = [32, 8], strides = [1, 1]} : vector<128x8xf32> to vector<32x8xf32>
    %71 = arith.addf %69, %70 : vector<32x8xf32>
    %72 = vector.extract_strided_slice %68 {offsets = [64, 0], sizes = [32, 8], strides = [1, 1]} : vector<128x8xf32> to vector<32x8xf32>
    %73 = arith.addf %71, %72 : vector<32x8xf32>
    %74 = vector.extract_strided_slice %68 {offsets = [96, 0], sizes = [32, 8], strides = [1, 1]} : vector<128x8xf32> to vector<32x8xf32>
    %75 = arith.addf %73, %74 : vector<32x8xf32>
    %cst_35 = arith.constant 5.000000e-01 : f32
    %76 = vector.broadcast %cst_35 : f32 to vector<32x8xf32>
    %77 = arith.mulf %45, %76 : vector<32x8xf32>
    %78 = arith.subf %41, %77 : vector<32x8xf32>
    %79 = arith.subf %78, %75 : vector<32x8xf32>
    %80 = arith.mulf %79, %10 : vector<32x8xf32>
    %81 = arith.addf %75, %80 : vector<32x8xf32>
    %cst_36 = arith.constant 5.000000e-01 : f32
    %82 = vector.broadcast %cst_36 : f32 to vector<32x8xf32>
    %83 = arith.cmpf ogt, %81, %82 : vector<32x8xf32>
    %84 = arith.extui %83 : vector<32x8xi1> to vector<32x8xi32>
    %85 = arith.sitofp %84 : vector<32x8xi32> to vector<32x8xf32>
    %cst_37 = arith.constant dense<0.000000e+00> : vector<8x8xf32>
    %86 = tpu.matmul %4, %85, %cst_37 {dimension_numbers = #tpu.dot_dimension_numbers<[1], [0], [0], [1], [0, 0, 1, 1], [], []>} : vector<8x32xf32>, vector<32x8xf32>, vector<8x8xf32> -> vector<8x8xf32>
    %87 = arith.addf %86, %16 : vector<8x8xf32>
    %cst_38 = arith.constant 5.000000e-01 : f32
    %88 = vector.broadcast %cst_38 : f32 to vector<8x8xf32>
    %89 = arith.mulf %57, %88 : vector<8x8xf32>
    %90 = arith.subf %53, %89 : vector<8x8xf32>
    %91 = arith.subf %90, %87 : vector<8x8xf32>
    %92 = arith.mulf %91, %13 : vector<8x8xf32>
    %93 = arith.addf %87, %92 : vector<8x8xf32>
    %cst_39 = arith.constant 5.000000e-01 : f32
    %94 = vector.broadcast %cst_39 : f32 to vector<8x8xf32>
    %95 = arith.cmpf ogt, %93, %94 : vector<8x8xf32>
    %96 = arith.extui %95 : vector<8x8xi1> to vector<8x8xi32>
    %97 = arith.sitofp %96 : vector<8x8xi32> to vector<8x8xf32>
    %98 = arith.index_cast %c1_i32 : i32 to index
    %c0_40 = arith.constant 0 : index
    %c0_41 = arith.constant 0 : index
    %99 = vector.load %arg9[%98, %c0_40, %c0_41] : memref<8x8x8xf32, #tpu.memory_space<vmem>>, vector<1x8x8xf32>
    %100 = vector.shape_cast %99 : vector<1x8x8xf32> to vector<8x8xf32>
    %101 = vector.shape_cast %93 : vector<8x8xf32> to vector<1x8x8xf32>
    tpu.vector_store %arg9[%98, %c0_40, %c0_41], %101 {strides = array<i32>} : memref<8x8x8xf32, #tpu.memory_space<vmem>>, vector<1x8x8xf32>,
    %c2_i32 = arith.constant 2 : i32
    %102 = arith.index_cast %c2_i32 : i32 to index
    %c0_42 = arith.constant 0 : index
    %c0_43 = arith.constant 0 : index
    %103 = vector.load %arg2[%102, %c0_42, %c0_43] : memref<8x5x8xf32, #tpu.memory_space<vmem>>, vector<1x5x8xf32>
    %104 = vector.shape_cast %103 : vector<1x5x8xf32> to vector<5x8xf32>
    %cst_44 = arith.constant dense<0.000000e+00> : vector<128x8xf32>
    %105 = tpu.matmul %3, %104, %cst_44 {dimension_numbers = #tpu.dot_dimension_numbers<[1], [0], [0], [1], [0, 0, 1, 1], [], []>} : vector<128x5xf32>, vector<5x8xf32>, vector<128x8xf32> -> vector<128x8xf32>
    %106 = arith.subf %68, %105 : vector<128x8xf32>
    %107 = arith.mulf %106, %7 : vector<128x8xf32>
    %108 = arith.addf %105, %107 : vector<128x8xf32>
    %109 = vector.extract_strided_slice %108 {offsets = [0, 0], sizes = [32, 8], strides = [1, 1]} : vector<128x8xf32> to vector<32x8xf32>
    %110 = vector.extract_strided_slice %108 {offsets = [32, 0], sizes = [32, 8], strides = [1, 1]} : vector<128x8xf32> to vector<32x8xf32>
    %111 = arith.addf %109, %110 : vector<32x8xf32>
    %112 = vector.extract_strided_slice %108 {offsets = [64, 0], sizes = [32, 8], strides = [1, 1]} : vector<128x8xf32> to vector<32x8xf32>
    %113 = arith.addf %111, %112 : vector<32x8xf32>
    %114 = vector.extract_strided_slice %108 {offsets = [96, 0], sizes = [32, 8], strides = [1, 1]} : vector<128x8xf32> to vector<32x8xf32>
    %115 = arith.addf %113, %114 : vector<32x8xf32>
    %cst_45 = arith.constant 5.000000e-01 : f32
    %116 = vector.broadcast %cst_45 : f32 to vector<32x8xf32>
    %117 = arith.mulf %85, %116 : vector<32x8xf32>
    %118 = arith.subf %81, %117 : vector<32x8xf32>
    %119 = arith.subf %118, %115 : vector<32x8xf32>
    %120 = arith.mulf %119, %10 : vector<32x8xf32>
    %121 = arith.addf %115, %120 : vector<32x8xf32>
    %cst_46 = arith.constant 5.000000e-01 : f32
    %122 = vector.broadcast %cst_46 : f32 to vector<32x8xf32>
    %123 = arith.cmpf ogt, %121, %122 : vector<32x8xf32>
    %124 = arith.extui %123 : vector<32x8xi1> to vector<32x8xi32>
    %125 = arith.sitofp %124 : vector<32x8xi32> to vector<32x8xf32>
    %cst_47 = arith.constant dense<0.000000e+00> : vector<8x8xf32>
    %126 = tpu.matmul %4, %125, %cst_47 {dimension_numbers = #tpu.dot_dimension_numbers<[1], [0], [0], [1], [0, 0, 1, 1], [], []>} : vector<8x32xf32>, vector<32x8xf32>, vector<8x8xf32> -> vector<8x8xf32>
    %127 = arith.addf %126, %16 : vector<8x8xf32>
    %cst_48 = arith.constant 5.000000e-01 : f32
    %128 = vector.broadcast %cst_48 : f32 to vector<8x8xf32>
    %129 = arith.mulf %97, %128 : vector<8x8xf32>
    %130 = arith.subf %93, %129 : vector<8x8xf32>
    %131 = arith.subf %130, %127 : vector<8x8xf32>
    %132 = arith.mulf %131, %13 : vector<8x8xf32>
    %133 = arith.addf %127, %132 : vector<8x8xf32>
    %cst_49 = arith.constant 5.000000e-01 : f32
    %134 = vector.broadcast %cst_49 : f32 to vector<8x8xf32>
    %135 = arith.cmpf ogt, %133, %134 : vector<8x8xf32>
    %136 = arith.extui %135 : vector<8x8xi1> to vector<8x8xi32>
    %137 = arith.sitofp %136 : vector<8x8xi32> to vector<8x8xf32>
    %138 = arith.index_cast %c2_i32 : i32 to index
    %c0_50 = arith.constant 0 : index
    %c0_51 = arith.constant 0 : index
    %139 = vector.load %arg9[%138, %c0_50, %c0_51] : memref<8x8x8xf32, #tpu.memory_space<vmem>>, vector<1x8x8xf32>
    %140 = vector.shape_cast %139 : vector<1x8x8xf32> to vector<8x8xf32>
    %141 = vector.shape_cast %133 : vector<8x8xf32> to vector<1x8x8xf32>
    tpu.vector_store %arg9[%138, %c0_50, %c0_51], %141 {strides = array<i32>} : memref<8x8x8xf32, #tpu.memory_space<vmem>>, vector<1x8x8xf32>,
    %c3_i32 = arith.constant 3 : i32
    %142 = arith.index_cast %c3_i32 : i32 to index
    %c0_52 = arith.constant 0 : index
    %c0_53 = arith.constant 0 : index
    %143 = vector.load %arg2[%142, %c0_52, %c0_53] : memref<8x5x8xf32, #tpu.memory_space<vmem>>, vector<1x5x8xf32>
    %144 = vector.shape_cast %143 : vector<1x5x8xf32> to vector<5x8xf32>
    %cst_54 = arith.constant dense<0.000000e+00> : vector<128x8xf32>
    %145 = tpu.matmul %3, %144, %cst_54 {dimension_numbers = #tpu.dot_dimension_numbers<[1], [0], [0], [1], [0, 0, 1, 1], [], []>} : vector<128x5xf32>, vector<5x8xf32>, vector<128x8xf32> -> vector<128x8xf32>
    %146 = arith.subf %108, %145 : vector<128x8xf32>
    %147 = arith.mulf %146, %7 : vector<128x8xf32>
    %148 = arith.addf %145, %147 : vector<128x8xf32>
    %149 = vector.extract_strided_slice %148 {offsets = [0, 0], sizes = [32, 8], strides = [1, 1]} : vector<128x8xf32> to vector<32x8xf32>
    %150 = vector.extract_strided_slice %148 {offsets = [32, 0], sizes = [32, 8], strides = [1, 1]} : vector<128x8xf32> to vector<32x8xf32>
    %151 = arith.addf %149, %150 : vector<32x8xf32>
    %152 = vector.extract_strided_slice %148 {offsets = [64, 0], sizes = [32, 8], strides = [1, 1]} : vector<128x8xf32> to vector<32x8xf32>
    %153 = arith.addf %151, %152 : vector<32x8xf32>
    %154 = vector.extract_strided_slice %148 {offsets = [96, 0], sizes = [32, 8], strides = [1, 1]} : vector<128x8xf32> to vector<32x8xf32>
    %155 = arith.addf %153, %154 : vector<32x8xf32>
    %cst_55 = arith.constant 5.000000e-01 : f32
    %156 = vector.broadcast %cst_55 : f32 to vector<32x8xf32>
    %157 = arith.mulf %125, %156 : vector<32x8xf32>
    %158 = arith.subf %121, %157 : vector<32x8xf32>
    %159 = arith.subf %158, %155 : vector<32x8xf32>
    %160 = arith.mulf %159, %10 : vector<32x8xf32>
    %161 = arith.addf %155, %160 : vector<32x8xf32>
    %cst_56 = arith.constant 5.000000e-01 : f32
    %162 = vector.broadcast %cst_56 : f32 to vector<32x8xf32>
    %163 = arith.cmpf ogt, %161, %162 : vector<32x8xf32>
    %164 = arith.extui %163 : vector<32x8xi1> to vector<32x8xi32>
    %165 = arith.sitofp %164 : vector<32x8xi32> to vector<32x8xf32>
    %cst_57 = arith.constant dense<0.000000e+00> : vector<8x8xf32>
    %166 = tpu.matmul %4, %165, %cst_57 {dimension_numbers = #tpu.dot_dimension_numbers<[1], [0], [0], [1], [0, 0, 1, 1], [], []>} : vector<8x32xf32>, vector<32x8xf32>, vector<8x8xf32> -> vector<8x8xf32>
    %167 = arith.addf %166, %16 : vector<8x8xf32>
    %cst_58 = arith.constant 5.000000e-01 : f32
    %168 = vector.broadcast %cst_58 : f32 to vector<8x8xf32>
    %169 = arith.mulf %137, %168 : vector<8x8xf32>
    %170 = arith.subf %133, %169 : vector<8x8xf32>
    %171 = arith.subf %170, %167 : vector<8x8xf32>
    %172 = arith.mulf %171, %13 : vector<8x8xf32>
    %173 = arith.addf %167, %172 : vector<8x8xf32>
    %cst_59 = arith.constant 5.000000e-01 : f32
    %174 = vector.broadcast %cst_59 : f32 to vector<8x8xf32>
    %175 = arith.cmpf ogt, %173, %174 : vector<8x8xf32>
    %176 = arith.extui %175 : vector<8x8xi1> to vector<8x8xi32>
    %177 = arith.sitofp %176 : vector<8x8xi32> to vector<8x8xf32>
    %178 = arith.index_cast %c3_i32 : i32 to index
    %c0_60 = arith.constant 0 : index
    %c0_61 = arith.constant 0 : index
    %179 = vector.load %arg9[%178, %c0_60, %c0_61] : memref<8x8x8xf32, #tpu.memory_space<vmem>>, vector<1x8x8xf32>
    %180 = vector.shape_cast %179 : vector<1x8x8xf32> to vector<8x8xf32>
    %181 = vector.shape_cast %173 : vector<8x8xf32> to vector<1x8x8xf32>
    tpu.vector_store %arg9[%178, %c0_60, %c0_61], %181 {strides = array<i32>} : memref<8x8x8xf32, #tpu.memory_space<vmem>>, vector<1x8x8xf32>,
    %c4_i32 = arith.constant 4 : i32
    %182 = arith.index_cast %c4_i32 : i32 to index
    %c0_62 = arith.constant 0 : index
    %c0_63 = arith.constant 0 : index
    %183 = vector.load %arg2[%182, %c0_62, %c0_63] : memref<8x5x8xf32, #tpu.memory_space<vmem>>, vector<1x5x8xf32>
    %184 = vector.shape_cast %183 : vector<1x5x8xf32> to vector<5x8xf32>
    %cst_64 = arith.constant dense<0.000000e+00> : vector<128x8xf32>
    %185 = tpu.matmul %3, %184, %cst_64 {dimension_numbers = #tpu.dot_dimension_numbers<[1], [0], [0], [1], [0, 0, 1, 1], [], []>} : vector<128x5xf32>, vector<5x8xf32>, vector<128x8xf32> -> vector<128x8xf32>
    %186 = arith.subf %148, %185 : vector<128x8xf32>
    %187 = arith.mulf %186, %7 : vector<128x8xf32>
    %188 = arith.addf %185, %187 : vector<128x8xf32>
    %189 = vector.extract_strided_slice %188 {offsets = [0, 0], sizes = [32, 8], strides = [1, 1]} : vector<128x8xf32> to vector<32x8xf32>
    %190 = vector.extract_strided_slice %188 {offsets = [32, 0], sizes = [32, 8], strides = [1, 1]} : vector<128x8xf32> to vector<32x8xf32>
    %191 = arith.addf %189, %190 : vector<32x8xf32>
    %192 = vector.extract_strided_slice %188 {offsets = [64, 0], sizes = [32, 8], strides = [1, 1]} : vector<128x8xf32> to vector<32x8xf32>
    %193 = arith.addf %191, %192 : vector<32x8xf32>
    %194 = vector.extract_strided_slice %188 {offsets = [96, 0], sizes = [32, 8], strides = [1, 1]} : vector<128x8xf32> to vector<32x8xf32>
    %195 = arith.addf %193, %194 : vector<32x8xf32>
    %cst_65 = arith.constant 5.000000e-01 : f32
    %196 = vector.broadcast %cst_65 : f32 to vector<32x8xf32>
    %197 = arith.mulf %165, %196 : vector<32x8xf32>
    %198 = arith.subf %161, %197 : vector<32x8xf32>
    %199 = arith.subf %198, %195 : vector<32x8xf32>
    %200 = arith.mulf %199, %10 : vector<32x8xf32>
    %201 = arith.addf %195, %200 : vector<32x8xf32>
    %cst_66 = arith.constant 5.000000e-01 : f32
    %202 = vector.broadcast %cst_66 : f32 to vector<32x8xf32>
    %203 = arith.cmpf ogt, %201, %202 : vector<32x8xf32>
    %204 = arith.extui %203 : vector<32x8xi1> to vector<32x8xi32>
    %205 = arith.sitofp %204 : vector<32x8xi32> to vector<32x8xf32>
    %cst_67 = arith.constant dense<0.000000e+00> : vector<8x8xf32>
    %206 = tpu.matmul %4, %205, %cst_67 {dimension_numbers = #tpu.dot_dimension_numbers<[1], [0], [0], [1], [0, 0, 1, 1], [], []>} : vector<8x32xf32>, vector<32x8xf32>, vector<8x8xf32> -> vector<8x8xf32>
    %207 = arith.addf %206, %16 : vector<8x8xf32>
    %cst_68 = arith.constant 5.000000e-01 : f32
    %208 = vector.broadcast %cst_68 : f32 to vector<8x8xf32>
    %209 = arith.mulf %177, %208 : vector<8x8xf32>
    %210 = arith.subf %173, %209 : vector<8x8xf32>
    %211 = arith.subf %210, %207 : vector<8x8xf32>
    %212 = arith.mulf %211, %13 : vector<8x8xf32>
    %213 = arith.addf %207, %212 : vector<8x8xf32>
    %cst_69 = arith.constant 5.000000e-01 : f32
    %214 = vector.broadcast %cst_69 : f32 to vector<8x8xf32>
    %215 = arith.cmpf ogt, %213, %214 : vector<8x8xf32>
    %216 = arith.extui %215 : vector<8x8xi1> to vector<8x8xi32>
    %217 = arith.sitofp %216 : vector<8x8xi32> to vector<8x8xf32>
    %218 = arith.index_cast %c4_i32 : i32 to index
    %c0_70 = arith.constant 0 : index
    %c0_71 = arith.constant 0 : index
    %219 = vector.load %arg9[%218, %c0_70, %c0_71] : memref<8x8x8xf32, #tpu.memory_space<vmem>>, vector<1x8x8xf32>
    %220 = vector.shape_cast %219 : vector<1x8x8xf32> to vector<8x8xf32>
    %221 = vector.shape_cast %213 : vector<8x8xf32> to vector<1x8x8xf32>
    tpu.vector_store %arg9[%218, %c0_70, %c0_71], %221 {strides = array<i32>} : memref<8x8x8xf32, #tpu.memory_space<vmem>>, vector<1x8x8xf32>,
    %c5_i32 = arith.constant 5 : i32
    %222 = arith.index_cast %c5_i32 : i32 to index
    %c0_72 = arith.constant 0 : index
    %c0_73 = arith.constant 0 : index
    %223 = vector.load %arg2[%222, %c0_72, %c0_73] : memref<8x5x8xf32, #tpu.memory_space<vmem>>, vector<1x5x8xf32>
    %224 = vector.shape_cast %223 : vector<1x5x8xf32> to vector<5x8xf32>
    %cst_74 = arith.constant dense<0.000000e+00> : vector<128x8xf32>
    %225 = tpu.matmul %3, %224, %cst_74 {dimension_numbers = #tpu.dot_dimension_numbers<[1], [0], [0], [1], [0, 0, 1, 1], [], []>} : vector<128x5xf32>, vector<5x8xf32>, vector<128x8xf32> -> vector<128x8xf32>
    %226 = arith.subf %188, %225 : vector<128x8xf32>
    %227 = arith.mulf %226, %7 : vector<128x8xf32>
    %228 = arith.addf %225, %227 : vector<128x8xf32>
    %229 = vector.extract_strided_slice %228 {offsets = [0, 0], sizes = [32, 8], strides = [1, 1]} : vector<128x8xf32> to vector<32x8xf32>
    %230 = vector.extract_strided_slice %228 {offsets = [32, 0], sizes = [32, 8], strides = [1, 1]} : vector<128x8xf32> to vector<32x8xf32>
    %231 = arith.addf %229, %230 : vector<32x8xf32>
    %232 = vector.extract_strided_slice %228 {offsets = [64, 0], sizes = [32, 8], strides = [1, 1]} : vector<128x8xf32> to vector<32x8xf32>
    %233 = arith.addf %231, %232 : vector<32x8xf32>
    %234 = vector.extract_strided_slice %228 {offsets = [96, 0], sizes = [32, 8], strides = [1, 1]} : vector<128x8xf32> to vector<32x8xf32>
    %235 = arith.addf %233, %234 : vector<32x8xf32>
    %cst_75 = arith.constant 5.000000e-01 : f32
    %236 = vector.broadcast %cst_75 : f32 to vector<32x8xf32>
    %237 = arith.mulf %205, %236 : vector<32x8xf32>
    %238 = arith.subf %201, %237 : vector<32x8xf32>
    %239 = arith.subf %238, %235 : vector<32x8xf32>
    %240 = arith.mulf %239, %10 : vector<32x8xf32>
    %241 = arith.addf %235, %240 : vector<32x8xf32>
    %cst_76 = arith.constant 5.000000e-01 : f32
    %242 = vector.broadcast %cst_76 : f32 to vector<32x8xf32>
    %243 = arith.cmpf ogt, %241, %242 : vector<32x8xf32>
    %244 = arith.extui %243 : vector<32x8xi1> to vector<32x8xi32>
    %245 = arith.sitofp %244 : vector<32x8xi32> to vector<32x8xf32>
    %cst_77 = arith.constant dense<0.000000e+00> : vector<8x8xf32>
    %246 = tpu.matmul %4, %245, %cst_77 {dimension_numbers = #tpu.dot_dimension_numbers<[1], [0], [0], [1], [0, 0, 1, 1], [], []>} : vector<8x32xf32>, vector<32x8xf32>, vector<8x8xf32> -> vector<8x8xf32>
    %247 = arith.addf %246, %16 : vector<8x8xf32>
    %cst_78 = arith.constant 5.000000e-01 : f32
    %248 = vector.broadcast %cst_78 : f32 to vector<8x8xf32>
    %249 = arith.mulf %217, %248 : vector<8x8xf32>
    %250 = arith.subf %213, %249 : vector<8x8xf32>
    %251 = arith.subf %250, %247 : vector<8x8xf32>
    %252 = arith.mulf %251, %13 : vector<8x8xf32>
    %253 = arith.addf %247, %252 : vector<8x8xf32>
    %cst_79 = arith.constant 5.000000e-01 : f32
    %254 = vector.broadcast %cst_79 : f32 to vector<8x8xf32>
    %255 = arith.cmpf ogt, %253, %254 : vector<8x8xf32>
    %256 = arith.extui %255 : vector<8x8xi1> to vector<8x8xi32>
    %257 = arith.sitofp %256 : vector<8x8xi32> to vector<8x8xf32>
    %258 = arith.index_cast %c5_i32 : i32 to index
    %c0_80 = arith.constant 0 : index
    %c0_81 = arith.constant 0 : index
    %259 = vector.load %arg9[%258, %c0_80, %c0_81] : memref<8x8x8xf32, #tpu.memory_space<vmem>>, vector<1x8x8xf32>
    %260 = vector.shape_cast %259 : vector<1x8x8xf32> to vector<8x8xf32>
    %261 = vector.shape_cast %253 : vector<8x8xf32> to vector<1x8x8xf32>
    tpu.vector_store %arg9[%258, %c0_80, %c0_81], %261 {strides = array<i32>} : memref<8x8x8xf32, #tpu.memory_space<vmem>>, vector<1x8x8xf32>,
    %c6_i32 = arith.constant 6 : i32
    %262 = arith.index_cast %c6_i32 : i32 to index
    %c0_82 = arith.constant 0 : index
    %c0_83 = arith.constant 0 : index
    %263 = vector.load %arg2[%262, %c0_82, %c0_83] : memref<8x5x8xf32, #tpu.memory_space<vmem>>, vector<1x5x8xf32>
    %264 = vector.shape_cast %263 : vector<1x5x8xf32> to vector<5x8xf32>
    %cst_84 = arith.constant dense<0.000000e+00> : vector<128x8xf32>
    %265 = tpu.matmul %3, %264, %cst_84 {dimension_numbers = #tpu.dot_dimension_numbers<[1], [0], [0], [1], [0, 0, 1, 1], [], []>} : vector<128x5xf32>, vector<5x8xf32>, vector<128x8xf32> -> vector<128x8xf32>
    %266 = arith.subf %228, %265 : vector<128x8xf32>
    %267 = arith.mulf %266, %7 : vector<128x8xf32>
    %268 = arith.addf %265, %267 : vector<128x8xf32>
    %269 = vector.extract_strided_slice %268 {offsets = [0, 0], sizes = [32, 8], strides = [1, 1]} : vector<128x8xf32> to vector<32x8xf32>
    %270 = vector.extract_strided_slice %268 {offsets = [32, 0], sizes = [32, 8], strides = [1, 1]} : vector<128x8xf32> to vector<32x8xf32>
    %271 = arith.addf %269, %270 : vector<32x8xf32>
    %272 = vector.extract_strided_slice %268 {offsets = [64, 0], sizes = [32, 8], strides = [1, 1]} : vector<128x8xf32> to vector<32x8xf32>
    %273 = arith.addf %271, %272 : vector<32x8xf32>
    %274 = vector.extract_strided_slice %268 {offsets = [96, 0], sizes = [32, 8], strides = [1, 1]} : vector<128x8xf32> to vector<32x8xf32>
    %275 = arith.addf %273, %274 : vector<32x8xf32>
    %cst_85 = arith.constant 5.000000e-01 : f32
    %276 = vector.broadcast %cst_85 : f32 to vector<32x8xf32>
    %277 = arith.mulf %245, %276 : vector<32x8xf32>
    %278 = arith.subf %241, %277 : vector<32x8xf32>
    %279 = arith.subf %278, %275 : vector<32x8xf32>
    %280 = arith.mulf %279, %10 : vector<32x8xf32>
    %281 = arith.addf %275, %280 : vector<32x8xf32>
    %cst_86 = arith.constant 5.000000e-01 : f32
    %282 = vector.broadcast %cst_86 : f32 to vector<32x8xf32>
    %283 = arith.cmpf ogt, %281, %282 : vector<32x8xf32>
    %284 = arith.extui %283 : vector<32x8xi1> to vector<32x8xi32>
    %285 = arith.sitofp %284 : vector<32x8xi32> to vector<32x8xf32>
    %cst_87 = arith.constant dense<0.000000e+00> : vector<8x8xf32>
    %286 = tpu.matmul %4, %285, %cst_87 {dimension_numbers = #tpu.dot_dimension_numbers<[1], [0], [0], [1], [0, 0, 1, 1], [], []>} : vector<8x32xf32>, vector<32x8xf32>, vector<8x8xf32> -> vector<8x8xf32>
    %287 = arith.addf %286, %16 : vector<8x8xf32>
    %cst_88 = arith.constant 5.000000e-01 : f32
    %288 = vector.broadcast %cst_88 : f32 to vector<8x8xf32>
    %289 = arith.mulf %257, %288 : vector<8x8xf32>
    %290 = arith.subf %253, %289 : vector<8x8xf32>
    %291 = arith.subf %290, %287 : vector<8x8xf32>
    %292 = arith.mulf %291, %13 : vector<8x8xf32>
    %293 = arith.addf %287, %292 : vector<8x8xf32>
    %cst_89 = arith.constant 5.000000e-01 : f32
    %294 = vector.broadcast %cst_89 : f32 to vector<8x8xf32>
    %295 = arith.cmpf ogt, %293, %294 : vector<8x8xf32>
    %296 = arith.extui %295 : vector<8x8xi1> to vector<8x8xi32>
    %297 = arith.sitofp %296 : vector<8x8xi32> to vector<8x8xf32>
    %298 = arith.index_cast %c6_i32 : i32 to index
    %c0_90 = arith.constant 0 : index
    %c0_91 = arith.constant 0 : index
    %299 = vector.load %arg9[%298, %c0_90, %c0_91] : memref<8x8x8xf32, #tpu.memory_space<vmem>>, vector<1x8x8xf32>
    %300 = vector.shape_cast %299 : vector<1x8x8xf32> to vector<8x8xf32>
    %301 = vector.shape_cast %293 : vector<8x8xf32> to vector<1x8x8xf32>
    tpu.vector_store %arg9[%298, %c0_90, %c0_91], %301 {strides = array<i32>} : memref<8x8x8xf32, #tpu.memory_space<vmem>>, vector<1x8x8xf32>,
    %c7_i32 = arith.constant 7 : i32
    %302 = arith.index_cast %c7_i32 : i32 to index
    %c0_92 = arith.constant 0 : index
    %c0_93 = arith.constant 0 : index
    %303 = vector.load %arg2[%302, %c0_92, %c0_93] : memref<8x5x8xf32, #tpu.memory_space<vmem>>, vector<1x5x8xf32>
    %304 = vector.shape_cast %303 : vector<1x5x8xf32> to vector<5x8xf32>
    %cst_94 = arith.constant dense<0.000000e+00> : vector<128x8xf32>
    %305 = tpu.matmul %3, %304, %cst_94 {dimension_numbers = #tpu.dot_dimension_numbers<[1], [0], [0], [1], [0, 0, 1, 1], [], []>} : vector<128x5xf32>, vector<5x8xf32>, vector<128x8xf32> -> vector<128x8xf32>
    %306 = arith.subf %268, %305 : vector<128x8xf32>
    %307 = arith.mulf %306, %7 : vector<128x8xf32>
    %308 = arith.addf %305, %307 : vector<128x8xf32>
    %309 = vector.extract_strided_slice %308 {offsets = [0, 0], sizes = [32, 8], strides = [1, 1]} : vector<128x8xf32> to vector<32x8xf32>
    %310 = vector.extract_strided_slice %308 {offsets = [32, 0], sizes = [32, 8], strides = [1, 1]} : vector<128x8xf32> to vector<32x8xf32>
    %311 = arith.addf %309, %310 : vector<32x8xf32>
    %312 = vector.extract_strided_slice %308 {offsets = [64, 0], sizes = [32, 8], strides = [1, 1]} : vector<128x8xf32> to vector<32x8xf32>
    %313 = arith.addf %311, %312 : vector<32x8xf32>
    %314 = vector.extract_strided_slice %308 {offsets = [96, 0], sizes = [32, 8], strides = [1, 1]} : vector<128x8xf32> to vector<32x8xf32>
    %315 = arith.addf %313, %314 : vector<32x8xf32>
    %cst_95 = arith.constant 5.000000e-01 : f32
    %316 = vector.broadcast %cst_95 : f32 to vector<32x8xf32>
    %317 = arith.mulf %285, %316 : vector<32x8xf32>
    %318 = arith.subf %281, %317 : vector<32x8xf32>
    %319 = arith.subf %318, %315 : vector<32x8xf32>
    %320 = arith.mulf %319, %10 : vector<32x8xf32>
    %321 = arith.addf %315, %320 : vector<32x8xf32>
    %cst_96 = arith.constant 5.000000e-01 : f32
    %322 = vector.broadcast %cst_96 : f32 to vector<32x8xf32>
    %323 = arith.cmpf ogt, %321, %322 : vector<32x8xf32>
    %324 = arith.extui %323 : vector<32x8xi1> to vector<32x8xi32>
    %325 = arith.sitofp %324 : vector<32x8xi32> to vector<32x8xf32>
    %cst_97 = arith.constant dense<0.000000e+00> : vector<8x8xf32>
    %326 = tpu.matmul %4, %325, %cst_97 {dimension_numbers = #tpu.dot_dimension_numbers<[1], [0], [0], [1], [0, 0, 1, 1], [], []>} : vector<8x32xf32>, vector<32x8xf32>, vector<8x8xf32> -> vector<8x8xf32>
    %327 = arith.addf %326, %16 : vector<8x8xf32>
    %cst_98 = arith.constant 5.000000e-01 : f32
    %328 = vector.broadcast %cst_98 : f32 to vector<8x8xf32>
    %329 = arith.mulf %297, %328 : vector<8x8xf32>
    %330 = arith.subf %293, %329 : vector<8x8xf32>
    %331 = arith.subf %330, %327 : vector<8x8xf32>
    %332 = arith.mulf %331, %13 : vector<8x8xf32>
    %333 = arith.addf %327, %332 : vector<8x8xf32>
    %cst_99 = arith.constant 5.000000e-01 : f32
    %334 = vector.broadcast %cst_99 : f32 to vector<8x8xf32>
    %335 = arith.cmpf ogt, %333, %334 : vector<8x8xf32>
    %336 = arith.extui %335 : vector<8x8xi1> to vector<8x8xi32>
    %337 = arith.sitofp %336 : vector<8x8xi32> to vector<8x8xf32>
    %338 = arith.index_cast %c7_i32 : i32 to index
    %c0_100 = arith.constant 0 : index
    %c0_101 = arith.constant 0 : index
    %339 = vector.load %arg9[%338, %c0_100, %c0_101] : memref<8x8x8xf32, #tpu.memory_space<vmem>>, vector<1x8x8xf32>
    %340 = vector.shape_cast %339 : vector<1x8x8xf32> to vector<8x8xf32>
    %341 = vector.shape_cast %333 : vector<8x8xf32> to vector<1x8x8xf32>
    tpu.vector_store %arg9[%338, %c0_100, %c0_101], %341 {strides = array<i32>} : memref<8x8x8xf32, #tpu.memory_space<vmem>>, vector<1x8x8xf32>,
    %c8_i32 = arith.constant 8 : i32
    %c0_102 = arith.constant 0 : index
    %c0_103 = arith.constant 0 : index
    %342 = vector.load %arg10[%c0_102, %c0_103] : memref<128x8xf32, #tpu.memory_space<vmem>>, vector<128x8xf32>
    tpu.vector_store %arg10[%c0_102, %c0_103], %308 {strides = array<i32>} : memref<128x8xf32, #tpu.memory_space<vmem>>, vector<128x8xf32>,
    %c0_104 = arith.constant 0 : index
    %c0_105 = arith.constant 0 : index
    %343 = vector.load %arg11[%c0_104, %c0_105] : memref<32x8xf32, #tpu.memory_space<vmem>>, vector<32x8xf32>
    tpu.vector_store %arg11[%c0_104, %c0_105], %321 {strides = array<i32>} : memref<32x8xf32, #tpu.memory_space<vmem>>, vector<32x8xf32>,
    %c0_106 = arith.constant 0 : index
    %c0_107 = arith.constant 0 : index
    %344 = vector.load %arg12[%c0_106, %c0_107] : memref<32x8xf32, #tpu.memory_space<vmem>>, vector<32x8xf32>
    tpu.vector_store %arg12[%c0_106, %c0_107], %325 {strides = array<i32>} : memref<32x8xf32, #tpu.memory_space<vmem>>, vector<32x8xf32>,
    %c0_108 = arith.constant 0 : index
    %c0_109 = arith.constant 0 : index
    %345 = vector.load %arg13[%c0_108, %c0_109] : memref<8x8xf32, #tpu.memory_space<vmem>>, vector<8x8xf32>
    tpu.vector_store %arg13[%c0_108, %c0_109], %333 {strides = array<i32>} : memref<8x8xf32, #tpu.memory_space<vmem>>, vector<8x8xf32>,
    %c0_110 = arith.constant 0 : index
    %c0_111 = arith.constant 0 : index
    %346 = vector.load %arg14[%c0_110, %c0_111] : memref<8x8xf32, #tpu.memory_space<vmem>>, vector<8x8xf32>
    tpu.vector_store %arg14[%c0_110, %c0_111], %337 {strides = array<i32>} : memref<8x8xf32, #tpu.memory_space<vmem>>, vector<8x8xf32>,
    %c0_112 = arith.constant 0 : index
    %c0_113 = arith.constant 0 : index
    %c0_114 = arith.constant 0 : index
    %347 = vector.load %arg9[%c0_112, %c0_113, %c0_114] : memref<8x8x8xf32, #tpu.memory_space<vmem>>, vector<8x8x8xf32>
    %348 = vector.extract_strided_slice %347 {offsets = [0, 0, 0], sizes = [8, 6, 8], strides = [1, 1, 1]} : vector<8x8x8xf32> to vector<8x6x8xf32>
    %cst_115 = arith.constant dense<0xFF800000> : vector<8x8xf32>
    %349 = vector.multi_reduction <maximumf>, %348, %cst_115 [1] : vector<8x6x8xf32> to vector<8x8xf32>
    %350 = vector.shape_cast %349 : vector<8x8xf32> to vector<8x1x8xf32>
    %351 = vector.broadcast %350 : vector<8x1x8xf32> to vector<8x6x8xf32>
    %352 = arith.subf %348, %351 : vector<8x6x8xf32>
    %353 = math.exp %352 : vector<8x6x8xf32>
    %cst_116 = arith.constant dense<0.000000e+00> : vector<8x8xf32>
    %354 = vector.multi_reduction <add>, %353, %cst_116 [1] : vector<8x6x8xf32> to vector<8x8xf32>
    %355 = vector.shape_cast %354 : vector<8x8xf32> to vector<8x1x8xf32>
    %356 = math.log %355 : vector<8x1x8xf32>
    %357 = arith.addf %350, %356 : vector<8x1x8xf32>
    %358 = vector.broadcast %357 : vector<8x1x8xf32> to vector<8x8x8xf32>
    %359 = arith.subf %347, %358 : vector<8x8x8xf32>
    %c0_117 = arith.constant 0 : index
    %c0_118 = arith.constant 0 : index
    %c0_119 = arith.constant 0 : index
    %360 = vector.load %arg9[%c0_117, %c0_118, %c0_119] : memref<8x8x8xf32, #tpu.memory_space<vmem>>, vector<8x8x8xf32>
    tpu.vector_store %arg9[%c0_117, %c0_118, %c0_119], %359 {strides = array<i32>} : memref<8x8x8xf32, #tpu.memory_space<vmem>>, vector<8x8x8xf32>,
    return
  }
  func.func @transform_0(%arg0: i32, %arg1: i32) -> (i32, i32, i32) {
    %c0_i32 = arith.constant 0 : i32
    %c0_i32_0 = arith.constant 0 : i32
    return %arg1, %c0_i32, %arg0 : i32, i32, i32
  }
  func.func @transform_1(%arg0: i32, %arg1: i32) -> (i32, i32) {
    %c0_i32 = arith.constant 0 : i32
    %c0_i32_0 = arith.constant 0 : i32
    %c0_i32_1 = arith.constant 0 : i32
    return %c0_i32, %c0_i32_0 : i32, i32
  }
  func.func @transform_2(%arg0: i32, %arg1: i32) -> (i32, i32) {
    %c0_i32 = arith.constant 0 : i32
    %c0_i32_0 = arith.constant 0 : i32
    %c0_i32_1 = arith.constant 0 : i32
    return %c0_i32, %c0_i32_0 : i32, i32
  }
  func.func @transform_3(%arg0: i32, %arg1: i32) -> (i32, i32) {
    %c0_i32 = arith.constant 0 : i32
    %c0_i32_0 = arith.constant 0 : i32
    %c0_i32_1 = arith.constant 0 : i32
    return %c0_i32, %c0_i32_0 : i32, i32
  }
  func.func @transform_4(%arg0: i32, %arg1: i32) -> (i32, i32) {
    %c0_i32 = arith.constant 0 : i32
    %c0_i32_0 = arith.constant 0 : i32
    %c0_i32_1 = arith.constant 0 : i32
    return %c0_i32, %c0_i32_0 : i32, i32
  }
  func.func @transform_5(%arg0: i32, %arg1: i32) -> (i32, i32) {
    %c0_i32 = arith.constant 0 : i32
    %c0_i32_0 = arith.constant 0 : i32
    %c0_i32_1 = arith.constant 0 : i32
    return %c0_i32, %c0_i32_0 : i32, i32
  }
  func.func @transform_6(%arg0: i32, %arg1: i32) -> (i32, i32) {
    %c0_i32 = arith.constant 0 : i32
    %c0_i32_0 = arith.constant 0 : i32
    %c0_i32_1 = arith.constant 0 : i32
    return %c0_i32, %c0_i32_0 : i32, i32
  }
  func.func @transform_7(%arg0: i32, %arg1: i32) -> (i32, i32, i32) {
    %c0_i32 = arith.constant 0 : i32
    %c0_i32_0 = arith.constant 0 : i32
    return %arg1, %c0_i32, %arg0 : i32, i32, i32
  }
}

</mosaic_0001>

<llo_original>
// kernel: tpu_custom_call.1
$region0: #{tpu_custom_call.1}
  #allocation0 [shape = 'u32[]', space=smem, size = 0x4, offset = 0x4, fixed_abs, tag = 'smem constant byte address 0x4 - core index']
  #allocation1 [shape = 'u32[72,128]{1,0:T(1,128)}', space=vmem, size = 0x9000, scoped, tag = 'internal scratch']
  #allocation2 [shape = 'f32[128,8]{1,0:T(8,128)}', space=vmem, size = 0x10000, scoped, tag = 'scratch operand']
  #allocation3 [shape = 'f32[32,8]{1,0:T(8,128)}', space=vmem, size = 0x4000, scoped, tag = 'scratch operand']
  #allocation4 [shape = 'f32[32,8]{1,0:T(8,128)}', space=vmem, size = 0x4000, scoped, tag = 'scratch operand']
  #allocation5 [shape = 'f32[8,8]{1,0:T(8,128)}', space=vmem, size = 0x1000, scoped, tag = 'scratch operand']
  #allocation6 [shape = 'f32[8,8]{1,0:T(8,128)}', space=vmem, size = 0x1000, scoped, tag = 'scratch operand']
  %s0 = inlined_call_operand.vmem [shape: f32[8,5,8], index: 0, kind: input, shape index: {}]
  %s1 = inlined_call_operand.vmem [shape: f32[128,5], index: 1, kind: input, shape index: {}]
  %s2 = inlined_call_operand.vmem [shape: f32[128,1], index: 2, kind: input, shape index: {}]
  %s3 = inlined_call_operand.vmem [shape: f32[32,1], index: 3, kind: input, shape index: {}]
  %s4 = inlined_call_operand.vmem [shape: f32[8,32], index: 4, kind: input, shape index: {}]
  %s5 = inlined_call_operand.vmem [shape: f32[8,1], index: 5, kind: input, shape index: {}]
  %s6 = inlined_call_operand.vmem [shape: f32[8,1], index: 6, kind: input, shape index: {}]
  %s7 = inlined_call_operand.hbm [shape: f32[8,8,8], index: 7, kind: output, shape index: {}]
  %s8 = sld [smem:[#allocation0]]
  $region42: #{tpu_custom_call.1} parent=0
    _
  %s10 = ssub.s32 1, %s8
  %s11 = scalar_select 0, %s10, %s8
  $region1: #{tpu_custom_call.1} parent=0
    #allocation7 [shape = 'u8[32768]{0}', space=vmem, size = 0x8000, scoped, tag = 'output window, operand 0, single buffered']
    #allocation8 [shape = 's32[1]{0}', space=sflag, size = 0x4, scoped, tag = 'scoped memory for tpu_custom_call.1']
    %12 = vsyncpa [#allocation8], 0
    // Predicated region
    $region2: #{tpu_custom_call.1} parent=1 // pred_check
      _
    $region3: #{tpu_custom_call.1} parent=1 // pred_check_branch
      %14 = sbr.rel (0) target = $region5
    $region4: #{tpu_custom_call.1} parent=1 // pred_region
      _
    $region5: #{tpu_custom_call.1} parent=1 // pred_fallthru
      _
    // Predicated region
    $region6: #{tpu_custom_call.1} parent=1 // pred_check
      _
    $region7: #{tpu_custom_call.1} parent=1 // pred_check_branch
      %16 = sbr.rel (0) target = $region9
    $region8: #{tpu_custom_call.1} parent=1 // pred_region
      _
    $region9: #{tpu_custom_call.1} parent=1 // pred_fallthru
      _
    // Predicated region
    $region10: #{tpu_custom_call.1} parent=1 // pred_check
      _
    $region11: #{tpu_custom_call.1} parent=1 // pred_check_branch
      %18 = sbr.rel (0) target = $region13
    $region12: #{tpu_custom_call.1} parent=1 // pred_region
      _
    $region13: #{tpu_custom_call.1} parent=1 // pred_fallthru
      _
    // Predicated region
    $region14: #{tpu_custom_call.1} parent=1 // pred_check
      _
    $region15: #{tpu_custom_call.1} parent=1 // pred_check_branch
      %20 = sbr.rel (0) target = $region17
    $region16: #{tpu_custom_call.1} parent=1 // pred_region
      _
    $region17: #{tpu_custom_call.1} parent=1 // pred_fallthru
      _
    // Predicated region
    $region18: #{tpu_custom_call.1} parent=1 // pred_check
      _
    $region19: #{tpu_custom_call.1} parent=1 // pred_check_branch
      %22 = sbr.rel (0) target = $region21
    $region20: #{tpu_custom_call.1} parent=1 // pred_region
      _
    $region21: #{tpu_custom_call.1} parent=1 // pred_fallthru
      _
    // Predicated region
    $region22: #{tpu_custom_call.1} parent=1 // pred_check
      _
    $region23: #{tpu_custom_call.1} parent=1 // pred_check_branch
      %24 = sbr.rel (0) target = $region25
    $region24: #{tpu_custom_call.1} parent=1 // pred_region
      _
    $region25: #{tpu_custom_call.1} parent=1 // pred_fallthru
      _
    // Predicated region
    $region26: #{tpu_custom_call.1} parent=1 // pred_check
      _
    $region27: #{tpu_custom_call.1} parent=1 // pred_check_branch
      %26 = sbr.rel (0) target = $region29
    $region28: #{tpu_custom_call.1} parent=1 // pred_region
      _
    $region29: #{tpu_custom_call.1} parent=1 // pred_fallthru
      _
    %p27 = scmp.eq.s32.totalorder 0, 0
    // Predicated region
    $region30: #{tpu_custom_call.1} parent=1 // pred_check
      %p28 = pneg %p27
    $region31: #{tpu_custom_call.1} parent=1 // pred_check_branch
      %30 = sbr.rel (%p28) target = $region33
    $region32: #{tpu_custom_call.1} parent=1 // pred_region
      %vm31 = vcmask 64512
      %32 = vst.msk [vmem:[#allocation2] sm:$0xff] %vm31, 0.0
      %33 = vst.msk [vmem:[#allocation2 + $0x8] sm:$0xff] %vm31, 0.0
      %34 = vst.msk [vmem:[#allocation2 + $0x10] sm:$0xff] %vm31, 0.0
      %35 = vst.msk [vmem:[#allocation2 + $0x18] sm:$0xff] %vm31, 0.0
      %36 = vst.msk [vmem:[#allocation2 + $0x20] sm:$0xff] %vm31, 0.0
      %37 = vst.msk [vmem:[#allocation2 + $0x28] sm:$0xff] %vm31, 0.0
      %38 = vst.msk [vmem:[#allocation2 + $0x30] sm:$0xff] %vm31, 0.0
      %39 = vst.msk [vmem:[#allocation2 + $0x38] sm:$0xff] %vm31, 0.0
      %40 = vst.msk [vmem:[#allocation2 + $0x40] sm:$0xff] %vm31, 0.0
      %41 = vst.msk [vmem:[#allocation2 + $0x48] sm:$0xff] %vm31, 0.0
      %42 = vst.msk [vmem:[#allocation2 + $0x50] sm:$0xff] %vm31, 0.0
      %43 = vst.msk [vmem:[#allocation2 + $0x58] sm:$0xff] %vm31, 0.0
      %44 = vst.msk [vmem:[#allocation2 + $0x60] sm:$0xff] %vm31, 0.0
      %45 = vst.msk [vmem:[#allocation2 + $0x68] sm:$0xff] %vm31, 0.0
      %46 = vst.msk [vmem:[#allocation2 + $0x70] sm:$0xff] %vm31, 0.0
      %47 = vst.msk [vmem:[#allocation2 + $0x78] sm:$0xff] %vm31, 0.0
      %48 = vst.msk [vmem:[#allocation3] sm:$0xff] %vm31, 0.0
      %49 = vst.msk [vmem:[#allocation3 + $0x8] sm:$0xff] %vm31, 0.0
      %50 = vst.msk [vmem:[#allocation3 + $0x10] sm:$0xff] %vm31, 0.0
      %51 = vst.msk [vmem:[#allocation3 + $0x18] sm:$0xff] %vm31, 0.0
      %52 = vst.msk [vmem:[#allocation4] sm:$0xff] %vm31, 0.0
      %53 = vst.msk [vmem:[#allocation4 + $0x8] sm:$0xff] %vm31, 0.0
      %54 = vst.msk [vmem:[#allocation4 + $0x10] sm:$0xff] %vm31, 0.0
      %55 = vst.msk [vmem:[#allocation4 + $0x18] sm:$0xff] %vm31, 0.0
      %56 = vst.msk [vmem:[#allocation5] sm:$0xff] %vm31, 0.0
      %57 = vst.msk [vmem:[#allocation6] sm:$0xff] %vm31, 0.0
    $region33: #{tpu_custom_call.1} parent=1 // pred_fallthru
      _
    %v58 = vld [vmem:[%s1] sm:$0xff]
    %v59 = vld [vmem:[%s1 + $0x8] sm:$0xff]
    %v60 = vld [vmem:[%s1 + $0x10] sm:$0xff]
    %v61 = vld [vmem:[%s1 + $0x18] sm:$0xff]
    %v62 = vld [vmem:[%s1 + $0x20] sm:$0xff]
    %v63 = vld [vmem:[%s1 + $0x28] sm:$0xff]
    %v64 = vld [vmem:[%s1 + $0x30] sm:$0xff]
    %v65 = vld [vmem:[%s1 + $0x38] sm:$0xff]
    %v66 = vld [vmem:[%s1 + $0x40] sm:$0xff]
    %v67 = vld [vmem:[%s1 + $0x48] sm:$0xff]
    %v68 = vld [vmem:[%s1 + $0x50] sm:$0xff]
    %v69 = vld [vmem:[%s1 + $0x58] sm:$0xff]
    %v70 = vld [vmem:[%s1 + $0x60] sm:$0xff]
    %v71 = vld [vmem:[%s1 + $0x68] sm:$0xff]
    %v72 = vld [vmem:[%s1 + $0x70] sm:$0xff]
    %v73 = vld [vmem:[%s1 + $0x78] sm:$0xff]
    %v74 = vld [vmem:[%s4] sm:$0xff]
    %v75 = vld [vmem:[%s2] sm:$0xff]
    %v76 = vld [vmem:[%s2 + $0x8] sm:$0xff]
    %v77 = vld [vmem:[%s2 + $0x10] sm:$0xff]
    %v78 = vld [vmem:[%s2 + $0x18] sm:$0xff]
    %v79 = vld [vmem:[%s2 + $0x20] sm:$0xff]
    %v80 = vld [vmem:[%s2 + $0x28] sm:$0xff]
    %v81 = vld [vmem:[%s2 + $0x30] sm:$0xff]
    %v82 = vld [vmem:[%s2 + $0x38] sm:$0xff]
    %v83 = vld [vmem:[%s2 + $0x40] sm:$0xff]
    %v84 = vld [vmem:[%s2 + $0x48] sm:$0xff]
    %v85 = vld [vmem:[%s2 + $0x50] sm:$0xff]
    %v86 = vld [vmem:[%s2 + $0x58] sm:$0xff]
    %v87 = vld [vmem:[%s2 + $0x60] sm:$0xff]
    %v88 = vld [vmem:[%s2 + $0x68] sm:$0xff]
    %v89 = vld [vmem:[%s2 + $0x70] sm:$0xff]
    %v90 = vld [vmem:[%s2 + $0x78] sm:$0xff]
    %92 = vset.pattern.permute.xlu0 0
    %93 = vperm.xlu0 %92, %v75
    %v94 = vpop.permute.xlu0 %93
    %97 = vset.pattern.permute.xlu0 0
    %98 = vperm.xlu0 %97, %v76
    %v99 = vpop.permute.xlu0 %98
    %102 = vset.pattern.permute.xlu0 0
    %103 = vperm.xlu0 %102, %v77
    %v104 = vpop.permute.xlu0 %103
    %107 = vset.pattern.permute.xlu0 0
    %108 = vperm.xlu0 %107, %v78
    %v109 = vpop.permute.xlu0 %108
    %112 = vset.pattern.permute.xlu0 0
    %113 = vperm.xlu0 %112, %v79
    %v114 = vpop.permute.xlu0 %113
    %117 = vset.pattern.permute.xlu0 0
    %118 = vperm.xlu0 %117, %v80
    %v119 = vpop.permute.xlu0 %118
    %122 = vset.pattern.permute.xlu0 0
    %123 = vperm.xlu0 %122, %v81
    %v124 = vpop.permute.xlu0 %123
    %127 = vset.pattern.permute.xlu0 0
    %128 = vperm.xlu0 %127, %v82
    %v129 = vpop.permute.xlu0 %128
    %132 = vset.pattern.permute.xlu0 0
    %133 = vperm.xlu0 %132, %v83
    %v134 = vpop.permute.xlu0 %133
    %137 = vset.pattern.permute.xlu0 0
    %138 = vperm.xlu0 %137, %v84
    %v139 = vpop.permute.xlu0 %138
    %142 = vset.pattern.permute.xlu0 0
    %143 = vperm.xlu0 %142, %v85
    %v144 = vpop.permute.xlu0 %143
    %147 = vset.pattern.permute.xlu0 0
    %148 = vperm.xlu0 %147, %v86
    %v149 = vpop.permute.xlu0 %148
    %152 = vset.pattern.permute.xlu0 0
    %153 = vperm.xlu0 %152, %v87
    %v154 = vpop.permute.xlu0 %153
    %157 = vset.pattern.permute.xlu0 0
    %158 = vperm.xlu0 %157, %v88
    %v159 = vpop.permute.xlu0 %158
    %162 = vset.pattern.permute.xlu0 0
    %163 = vperm.xlu0 %162, %v89
    %v164 = vpop.permute.xlu0 %163
    %167 = vset.pattern.permute.xlu0 0
    %168 = vperm.xlu0 %167, %v90
    %v169 = vpop.permute.xlu0 %168
    %v171 = vld [vmem:[%s3] sm:$0xff]
    %v172 = vld [vmem:[%s3 + $0x8] sm:$0xff]
    %v173 = vld [vmem:[%s3 + $0x10] sm:$0xff]
    %v174 = vld [vmem:[%s3 + $0x18] sm:$0xff]
    %176 = vset.pattern.permute.xlu0 0
    %177 = vperm.xlu0 %176, %v171
    %v178 = vpop.permute.xlu0 %177
    %181 = vset.pattern.permute.xlu0 0
    %182 = vperm.xlu0 %181, %v172
    %v183 = vpop.permute.xlu0 %182
    %186 = vset.pattern.permute.xlu0 0
    %187 = vperm.xlu0 %186, %v173
    %v188 = vpop.permute.xlu0 %187
    %191 = vset.pattern.permute.xlu0 0
    %192 = vperm.xlu0 %191, %v174
    %v193 = vpop.permute.xlu0 %192
    %v195 = vld [vmem:[%s6] sm:$0xff]
    %197 = vset.pattern.permute.xlu0 0
    %198 = vperm.xlu0 %197, %v195
    %v199 = vpop.permute.xlu0 %198
    %v201 = vld [vmem:[%s5] sm:$0xff]
    %203 = vset.pattern.permute.xlu0 0
    %204 = vperm.xlu0 %203, %v201
    %v205 = vpop.permute.xlu0 %204
    %v207 = vld [vmem:[#allocation2] sm:$0xff]
    %v208 = vld [vmem:[#allocation2 + $0x8] sm:$0xff]
    %v209 = vld [vmem:[#allocation2 + $0x10] sm:$0xff]
    %v210 = vld [vmem:[#allocation2 + $0x18] sm:$0xff]
    %v211 = vld [vmem:[#allocation2 + $0x20] sm:$0xff]
    %v212 = vld [vmem:[#allocation2 + $0x28] sm:$0xff]
    %v213 = vld [vmem:[#allocation2 + $0x30] sm:$0xff]
    %v214 = vld [vmem:[#allocation2 + $0x38] sm:$0xff]
    %v215 = vld [vmem:[#allocation2 + $0x40] sm:$0xff]
    %v216 = vld [vmem:[#allocation2 + $0x48] sm:$0xff]
    %v217 = vld [vmem:[#allocation2 + $0x50] sm:$0xff]
    %v218 = vld [vmem:[#allocation2 + $0x58] sm:$0xff]
    %v219 = vld [vmem:[#allocation2 + $0x60] sm:$0xff]
    %v220 = vld [vmem:[#allocation2 + $0x68] sm:$0xff]
    %v221 = vld [vmem:[#allocation2 + $0x70] sm:$0xff]
    %v222 = vld [vmem:[#allocation2 + $0x78] sm:$0xff]
    %v223 = vld [vmem:[#allocation3] sm:$0xff]
    %v224 = vld [vmem:[#allocation3 + $0x8] sm:$0xff]
    %v225 = vld [vmem:[#allocation3 + $0x10] sm:$0xff]
    %v226 = vld [vmem:[#allocation3 + $0x18] sm:$0xff]
    %v227 = vld [vmem:[#allocation4] sm:$0xff]
    %v228 = vld [vmem:[#allocation4 + $0x8] sm:$0xff]
    %v229 = vld [vmem:[#allocation4 + $0x10] sm:$0xff]
    %v230 = vld [vmem:[#allocation4 + $0x18] sm:$0xff]
    %v231 = vld [vmem:[#allocation5] sm:$0xff]
    %v232 = vld [vmem:[#allocation6] sm:$0xff]
    %v233 = vld [vmem:[%s0] sm:$0x1f]
    %vm234 = vcmask 39936
    %v236 = vsel %vm234, %v58, 0
    %v239 = vsel %vm234, %v59, 0
    %v242 = vsel %vm234, %v60, 0
    %v245 = vsel %vm234, %v61, 0
    %v248 = vsel %vm234, %v62, 0
    %v251 = vsel %vm234, %v63, 0
    %v254 = vsel %vm234, %v64, 0
    %v257 = vsel %vm234, %v65, 0
    %v260 = vsel %vm234, %v66, 0
    %v263 = vsel %vm234, %v67, 0
    %v266 = vsel %vm234, %v68, 0
    %v269 = vsel %vm234, %v69, 0
    %v272 = vsel %vm234, %v70, 0
    %v275 = vsel %vm234, %v71, 0
    %v278 = vsel %vm234, %v72, 0
    %v281 = vsel %vm234, %v73, 0
    %vm283 = vcmask 1044480
    %v285 = vsel %vm283, %v233, 0
    %287 = vmatpush.msra.mxu0 0.0
    %288 = vmatpush.msra.mxu0 0.0
    %289 = vmatpush.msra.mxu0 0.0
    %290 = vmatpush.msra.mxu0 0.0
    %291 = vmatpush.msra.mxu0 0.0
    %292 = vmatpush.msra.mxu0 0.0
    %293 = vmatpush.msra.mxu0 0.0
    %294 = vmatpush.msra.mxu0 0.0
    %295 = vmatpush.msra.mxu0 0.0
    %296 = vmatpush.msra.mxu0 0.0
    %297 = vmatpush.msra.mxu0 0.0
    %298 = vmatpush.msra.mxu0 0.0
    %299 = vmatpush.msra.mxu0 0.0
    %300 = vmatpush.msra.mxu0 0.0
    %301 = vmatpush.msra.mxu0 0.0
    %302 = vmatpush.msra.mxu0 %v285
    %303 = vmatmul.f32.gmra.mxu0 %v236
    %v304 = vpop.f32.mrf.mxu0
    %v305 = vadd.f32 0.0, %v304
    %306 = vmatmul.f32.gmra.mxu0 %v239
    %v307 = vpop.f32.mrf.mxu0
    %v308 = vadd.f32 0.0, %v307
    %309 = vmatmul.f32.gmra.mxu0 %v242
    %v310 = vpop.f32.mrf.mxu0
    %v311 = vadd.f32 0.0, %v310
    %312 = vmatmul.f32.gmra.mxu0 %v245
    %v313 = vpop.f32.mrf.mxu0
    %v314 = vadd.f32 0.0, %v313
    %315 = vmatmul.f32.gmra.mxu0 %v248
    %v316 = vpop.f32.mrf.mxu0
    %v317 = vadd.f32 0.0, %v316
    %318 = vmatmul.f32.gmra.mxu0 %v251
    %v319 = vpop.f32.mrf.mxu0
    %v320 = vadd.f32 0.0, %v319
    %321 = vmatmul.f32.gmra.mxu0 %v254
    %v322 = vpop.f32.mrf.mxu0
    %v323 = vadd.f32 0.0, %v322
    %324 = vmatmul.f32.gmra.mxu0 %v257
    %v325 = vpop.f32.mrf.mxu0
    %v326 = vadd.f32 0.0, %v325
    %327 = vmatmul.f32.gmra.mxu0 %v260
    %v328 = vpop.f32.mrf.mxu0
    %v329 = vadd.f32 0.0, %v328
    %330 = vmatmul.f32.gmra.mxu0 %v263
    %v331 = vpop.f32.mrf.mxu0
    %v332 = vadd.f32 0.0, %v331
    %333 = vmatmul.f32.gmra.mxu0 %v266
    %v334 = vpop.f32.mrf.mxu0
    %v335 = vadd.f32 0.0, %v334
    %336 = vmatmul.f32.gmra.mxu0 %v269
    %v337 = vpop.f32.mrf.mxu0
    %v338 = vadd.f32 0.0, %v337
    %339 = vmatmul.f32.gmra.mxu0 %v272
    %v340 = vpop.f32.mrf.mxu0
    %v341 = vadd.f32 0.0, %v340
    %342 = vmatmul.f32.gmra.mxu0 %v275
    %v343 = vpop.f32.mrf.mxu0
    %v344 = vadd.f32 0.0, %v343
    %345 = vmatmul.f32.gmra.mxu0 %v278
    %v346 = vpop.f32.mrf.mxu0
    %v347 = vadd.f32 0.0, %v346
    %348 = vmatmul.f32.gmra.mxu0 %v281
    %v349 = vpop.f32.mrf.mxu0
    %v350 = vadd.f32 0.0, %v349
    %351 = vdwg.mxu0
    %v352 = vsub.f32 %v207, %v305
    %v353 = vsub.f32 %v208, %v308
    %v354 = vsub.f32 %v209, %v311
    %v355 = vsub.f32 %v210, %v314
    %v356 = vsub.f32 %v211, %v317
    %v357 = vsub.f32 %v212, %v320
    %v358 = vsub.f32 %v213, %v323
    %v359 = vsub.f32 %v214, %v326
    %v360 = vsub.f32 %v215, %v329
    %v361 = vsub.f32 %v216, %v332
    %v362 = vsub.f32 %v217, %v335
    %v363 = vsub.f32 %v218, %v338
    %v364 = vsub.f32 %v219, %v341
    %v365 = vsub.f32 %v220, %v344
    %v366 = vsub.f32 %v221, %v347
    %v367 = vsub.f32 %v222, %v350
    %v368 = vmul.f32 %v352, %v94
    %v369 = vmul.f32 %v353, %v99
    %v370 = vmul.f32 %v354, %v104
    %v371 = vmul.f32 %v355, %v109
    %v372 = vmul.f32 %v356, %v114
    %v373 = vmul.f32 %v357, %v119
    %v374 = vmul.f32 %v358, %v124
    %v375 = vmul.f32 %v359, %v129
    %v376 = vmul.f32 %v360, %v134
    %v377 = vmul.f32 %v361, %v139
    %v378 = vmul.f32 %v362, %v144
    %v379 = vmul.f32 %v363, %v149
    %v380 = vmul.f32 %v364, %v154
    %v381 = vmul.f32 %v365, %v159
    %v382 = vmul.f32 %v366, %v164
    %v383 = vmul.f32 %v367, %v169
    %v384 = vadd.f32 %v305, %v368
    %v385 = vadd.f32 %v308, %v369
    %v386 = vadd.f32 %v311, %v370
    %v387 = vadd.f32 %v314, %v371
    %v388 = vadd.f32 %v317, %v372
    %v389 = vadd.f32 %v320, %v373
    %v390 = vadd.f32 %v323, %v374
    %v391 = vadd.f32 %v326, %v375
    %v392 = vadd.f32 %v329, %v376
    %v393 = vadd.f32 %v332, %v377
    %v394 = vadd.f32 %v335, %v378
    %v395 = vadd.f32 %v338, %v379
    %v396 = vadd.f32 %v341, %v380
    %v397 = vadd.f32 %v344, %v381
    %v398 = vadd.f32 %v347, %v382
    %v399 = vadd.f32 %v350, %v383
    %v400 = vadd.f32 %v384, %v388
    %v401 = vadd.f32 %v385, %v389
    %v402 = vadd.f32 %v386, %v390
    %v403 = vadd.f32 %v387, %v391
    %v404 = vadd.f32 %v400, %v392
    %v405 = vadd.f32 %v401, %v393
    %v406 = vadd.f32 %v402, %v394
    %v407 = vadd.f32 %v403, %v395
    %v408 = vadd.f32 %v404, %v396
    %v409 = vadd.f32 %v405, %v397
    %v410 = vadd.f32 %v406, %v398
    %v411 = vadd.f32 %v407, %v399
    %v412 = vmul.f32 %v227, 0.5
    %v413 = vmul.f32 %v228, 0.5
    %v414 = vmul.f32 %v229, 0.5
    %v415 = vmul.f32 %v230, 0.5
    %v416 = vsub.f32 %v223, %v412
    %v417 = vsub.f32 %v224, %v413
    %v418 = vsub.f32 %v225, %v414
    %v419 = vsub.f32 %v226, %v415
    %v420 = vsub.f32 %v416, %v408
    %v421 = vsub.f32 %v417, %v409
    %v422 = vsub.f32 %v418, %v410
    %v423 = vsub.f32 %v419, %v411
    %v424 = vmul.f32 %v420, %v178
    %v425 = vmul.f32 %v421, %v183
    %v426 = vmul.f32 %v422, %v188
    %v427 = vmul.f32 %v423, %v193
    %v428 = vadd.f32 %v408, %v424
    %v429 = vadd.f32 %v409, %v425
    %v430 = vadd.f32 %v410, %v426
    %v431 = vadd.f32 %v411, %v427
    %vm432 = vcmp.gt.f32.partialorder %v428, 0.5
    %vm433 = vcmp.gt.f32.partialorder %v429, 0.5
    %vm434 = vcmp.gt.f32.partialorder %v430, 0.5
    %vm435 = vcmp.gt.f32.partialorder %v431, 0.5
    %v436 = vsel %vm432, 1, 0
    %v437 = vsel %vm433, 1, 0
    %v438 = vsel %vm434, 1, 0
    %v439 = vsel %vm435, 1, 0
    %v440 = vcvt.s32.f32 %v436
    %v441 = vcvt.s32.f32 %v437
    %v442 = vcvt.s32.f32 %v438
    %v443 = vcvt.s32.f32 %v439
    %vm444 = vcmask 261120
    %v446 = vsel %vm444, %v74, 0
    %448 = vmatpush.msra.mxu0 0.0
    %449 = vmatpush.msra.mxu0 0.0
    %450 = vmatpush.msra.mxu0 0.0
    %451 = vmatpush.msra.mxu0 0.0
    %452 = vmatpush.msra.mxu0 0.0
    %453 = vmatpush.msra.mxu0 0.0
    %454 = vmatpush.msra.mxu0 0.0
    %455 = vmatpush.msra.mxu0 0.0
    %456 = vmatpush.msra.mxu0 0.0
    %457 = vmatpush.msra.mxu0 0.0
    %458 = vmatpush.msra.mxu0 0.0
    %459 = vmatpush.msra.mxu0 0.0
    %460 = vmatpush.msra.mxu0 %v443
    %461 = vmatpush.msra.mxu0 %v442
    %462 = vmatpush.msra.mxu0 %v441
    %463 = vmatpush.msra.mxu0 %v440
    %464 = vmatmul.f32.gmra.mxu0 %v446
    %v465 = vpop.f32.mrf.mxu0
    %v466 = vadd.f32 %v205, %v465
    %467 = vdwg.mxu0
    %v468 = vmul.f32 %v232, 0.5
    %v469 = vsub.f32 %v231, %v468
    %v470 = vsub.f32 %v469, %v466
    %v471 = vmul.f32 %v470, %v199
    %v472 = vadd.f32 %v466, %v471
    %vm473 = vcmp.gt.f32.partialorder %v472, 0.5
    %v474 = vsel %vm473, 1, 0
    %v475 = vcvt.s32.f32 %v474
    %vm476 = vcmask 64512
    %477 = vst.msk [vmem:[#allocation7] sm:$0xff] %vm476, %v472
    %s478 = scalar_lea.vmem %s0, 8
    %v479 = vld [vmem:[%s478] sm:$0x1f]
    %v481 = vsel %vm283, %v479, 0
    %483 = vmatpush.msra.mxu0 0.0
    %484 = vmatpush.msra.mxu0 0.0
    %485 = vmatpush.msra.mxu0 0.0
    %486 = vmatpush.msra.mxu0 0.0
    %487 = vmatpush.msra.mxu0 0.0
    %488 = vmatpush.msra.mxu0 0.0
    %489 = vmatpush.msra.mxu0 0.0
    %490 = vmatpush.msra.mxu0 0.0
    %491 = vmatpush.msra.mxu0 0.0
    %492 = vmatpush.msra.mxu0 0.0
    %493 = vmatpush.msra.mxu0 0.0
    %494 = vmatpush.msra.mxu0 0.0
    %495 = vmatpush.msra.mxu0 0.0
    %496 = vmatpush.msra.mxu0 0.0
    %497 = vmatpush.msra.mxu0 0.0
    %498 = vmatpush.msra.mxu0 %v481
    %499 = vmatmul.f32.gmra.mxu0 %v236
    %v500 = vpop.f32.mrf.mxu0
    %v501 = vadd.f32 0.0, %v500
    %502 = vmatmul.f32.gmra.mxu0 %v239
    %v503 = vpop.f32.mrf.mxu0
    %v504 = vadd.f32 0.0, %v503
    %505 = vmatmul.f32.gmra.mxu0 %v242
    %v506 = vpop.f32.mrf.mxu0
    %v507 = vadd.f32 0.0, %v506
    %508 = vmatmul.f32.gmra.mxu0 %v245
    %v509 = vpop.f32.mrf.mxu0
    %v510 = vadd.f32 0.0, %v509
    %511 = vmatmul.f32.gmra.mxu0 %v248
    %v512 = vpop.f32.mrf.mxu0
    %v513 = vadd.f32 0.0, %v512
    %514 = vmatmul.f32.gmra.mxu0 %v251
    %v515 = vpop.f32.mrf.mxu0
    %v516 = vadd.f32 0.0, %v515
    %517 = vmatmul.f32.gmra.mxu0 %v254
    %v518 = vpop.f32.mrf.mxu0
    %v519 = vadd.f32 0.0, %v518
    %520 = vmatmul.f32.gmra.mxu0 %v257
    %v521 = vpop.f32.mrf.mxu0
    %v522 = vadd.f32 0.0, %v521
    %523 = vmatmul.f32.gmra.mxu0 %v260
    %v524 = vpop.f32.mrf.mxu0
    %v525 = vadd.f32 0.0, %v524
    %526 = vmatmul.f32.gmra.mxu0 %v263
    %v527 = vpop.f32.mrf.mxu0
    %v528 = vadd.f32 0.0, %v527
    %529 = vmatmul.f32.gmra.mxu0 %v266
    %v530 = vpop.f32.mrf.mxu0
    %v531 = vadd.f32 0.0, %v530
    %532 = vmatmul.f32.gmra.mxu0 %v269
    %v533 = vpop.f32.mrf.mxu0
    %v534 = vadd.f32 0.0, %v533
    %535 = vmatmul.f32.gmra.mxu0 %v272
    %v536 = vpop.f32.mrf.mxu0
    %v537 = vadd.f32 0.0, %v536
    %538 = vmatmul.f32.gmra.mxu0 %v275
    %v539 = vpop.f32.mrf.mxu0
    %v540 = vadd.f32 0.0, %v539
    %541 = vmatmul.f32.gmra.mxu0 %v278
    %v542 = vpop.f32.mrf.mxu0
    %v543 = vadd.f32 0.0, %v542
    %544 = vmatmul.f32.gmra.mxu0 %v281
    %v545 = vpop.f32.mrf.mxu0
    %v546 = vadd.f32 0.0, %v545
    %547 = vdwg.mxu0
    %v548 = vsub.f32 %v384, %v501
    %v549 = vsub.f32 %v385, %v504
    %v550 = vsub.f32 %v386, %v507
    %v551 = vsub.f32 %v387, %v510
    %v552 = vsub.f32 %v388, %v513
    %v553 = vsub.f32 %v389, %v516
    %v554 = vsub.f32 %v390, %v519
    %v555 = vsub.f32 %v391, %v522
    %v556 = vsub.f32 %v392, %v525
    %v557 = vsub.f32 %v393, %v528
    %v558 = vsub.f32 %v394, %v531
    %v559 = vsub.f32 %v395, %v534
    %v560 = vsub.f32 %v396, %v537
    %v561 = vsub.f32 %v397, %v540
    %v562 = vsub.f32 %v398, %v543
    %v563 = vsub.f32 %v399, %v546
    %v564 = vmul.f32 %v548, %v94
    %v565 = vmul.f32 %v549, %v99
    %v566 = vmul.f32 %v550, %v104
    %v567 = vmul.f32 %v551, %v109
    %v568 = vmul.f32 %v552, %v114
    %v569 = vmul.f32 %v553, %v119
    %v570 = vmul.f32 %v554, %v124
    %v571 = vmul.f32 %v555, %v129
    %v572 = vmul.f32 %v556, %v134
    %v573 = vmul.f32 %v557, %v139
    %v574 = vmul.f32 %v558, %v144
    %v575 = vmul.f32 %v559, %v149
    %v576 = vmul.f32 %v560, %v154
    %v577 = vmul.f32 %v561, %v159
    %v578 = vmul.f32 %v562, %v164
    %v579 = vmul.f32 %v563, %v169
    %v580 = vadd.f32 %v501, %v564
    %v581 = vadd.f32 %v504, %v565
    %v582 = vadd.f32 %v507, %v566
    %v583 = vadd.f32 %v510, %v567
    %v584 = vadd.f32 %v513, %v568
    %v585 = vadd.f32 %v516, %v569
    %v586 = vadd.f32 %v519, %v570
    %v587 = vadd.f32 %v522, %v571
    %v588 = vadd.f32 %v525, %v572
    %v589 = vadd.f32 %v528, %v573
    %v590 = vadd.f32 %v531, %v574
    %v591 = vadd.f32 %v534, %v575
    %v592 = vadd.f32 %v537, %v576
    %v593 = vadd.f32 %v540, %v577
    %v594 = vadd.f32 %v543, %v578
    %v595 = vadd.f32 %v546, %v579
    %v596 = vadd.f32 %v580, %v584
    %v597 = vadd.f32 %v581, %v585
    %v598 = vadd.f32 %v582, %v586
    %v599 = vadd.f32 %v583, %v587
    %v600 = vadd.f32 %v596, %v588
    %v601 = vadd.f32 %v597, %v589
    %v602 = vadd.f32 %v598, %v590
    %v603 = vadd.f32 %v599, %v591
    %v604 = vadd.f32 %v600, %v592
    %v605 = vadd.f32 %v601, %v593
    %v606 = vadd.f32 %v602, %v594
    %v607 = vadd.f32 %v603, %v595
    %v608 = vmul.f32 %v440, 0.5
    %v609 = vmul.f32 %v441, 0.5
    %v610 = vmul.f32 %v442, 0.5
    %v611 = vmul.f32 %v443, 0.5
    %v612 = vsub.f32 %v428, %v608
    %v613 = vsub.f32 %v429, %v609
    %v614 = vsub.f32 %v430, %v610
    %v615 = vsub.f32 %v431, %v611
    %v616 = vsub.f32 %v612, %v604
    %v617 = vsub.f32 %v613, %v605
    %v618 = vsub.f32 %v614, %v606
    %v619 = vsub.f32 %v615, %v607
    %v620 = vmul.f32 %v616, %v178
    %v621 = vmul.f32 %v617, %v183
    %v622 = vmul.f32 %v618, %v188
    %v623 = vmul.f32 %v619, %v193
    %v624 = vadd.f32 %v604, %v620
    %v625 = vadd.f32 %v605, %v621
    %v626 = vadd.f32 %v606, %v622
    %v627 = vadd.f32 %v607, %v623
    %vm628 = vcmp.gt.f32.partialorder %v624, 0.5
    %vm629 = vcmp.gt.f32.partialorder %v625, 0.5
    %vm630 = vcmp.gt.f32.partialorder %v626, 0.5
    %vm631 = vcmp.gt.f32.partialorder %v627, 0.5
    %v632 = vsel %vm628, 1, 0
    %v633 = vsel %vm629, 1, 0
    %v634 = vsel %vm630, 1, 0
    %v635 = vsel %vm631, 1, 0
    %v636 = vcvt.s32.f32 %v632
    %v637 = vcvt.s32.f32 %v633
    %v638 = vcvt.s32.f32 %v634
    %v639 = vcvt.s32.f32 %v635
    %640 = vmatpush.msra.mxu0 0.0
    %641 = vmatpush.msra.mxu0 0.0
    %642 = vmatpush.msra.mxu0 0.0
    %643 = vmatpush.msra.mxu0 0.0
    %644 = vmatpush.msra.mxu0 0.0
    %645 = vmatpush.msra.mxu0 0.0
    %646 = vmatpush.msra.mxu0 0.0
    %647 = vmatpush.msra.mxu0 0.0
    %648 = vmatpush.msra.mxu0 0.0
    %649 = vmatpush.msra.mxu0 0.0
    %650 = vmatpush.msra.mxu0 0.0
    %651 = vmatpush.msra.mxu0 0.0
    %652 = vmatpush.msra.mxu0 %v639
    %653 = vmatpush.msra.mxu0 %v638
    %654 = vmatpush.msra.mxu0 %v637
    %655 = vmatpush.msra.mxu0 %v636
    %656 = vmatmul.f32.gmra.mxu0 %v446
    %v657 = vpop.f32.mrf.mxu0
    %v658 = vadd.f32 %v205, %v657
    %659 = vdwg.mxu0
    %v660 = vmul.f32 %v475, 0.5
    %v661 = vsub.f32 %v472, %v660
    %v662 = vsub.f32 %v661, %v658
    %v663 = vmul.f32 %v662, %v199
    %v664 = vadd.f32 %v658, %v663
    %vm665 = vcmp.gt.f32.partialorder %v664, 0.5
    %v666 = vsel %vm665, 1, 0
    %v667 = vcvt.s32.f32 %v666
    %s668 = scalar_lea.vmem [#allocation7], 8
    %669 = vst.msk [vmem:[%s668] sm:$0xff] %vm476, %v664
    %s670 = scalar_lea.vmem %s0, 16
    %v671 = vld [vmem:[%s670] sm:$0x1f]
    %v673 = vsel %vm283, %v671, 0
    %675 = vmatpush.msra.mxu0 0.0
    %676 = vmatpush.msra.mxu0 0.0
    %677 = vmatpush.msra.mxu0 0.0
    %678 = vmatpush.msra.mxu0 0.0
    %679 = vmatpush.msra.mxu0 0.0
    %680 = vmatpush.msra.mxu0 0.0
    %681 = vmatpush.msra.mxu0 0.0
    %682 = vmatpush.msra.mxu0 0.0
    %683 = vmatpush.msra.mxu0 0.0
    %684 = vmatpush.msra.mxu0 0.0
    %685 = vmatpush.msra.mxu0 0.0
    %686 = vmatpush.msra.mxu0 0.0
    %687 = vmatpush.msra.mxu0 0.0
    %688 = vmatpush.msra.mxu0 0.0
    %689 = vmatpush.msra.mxu0 0.0
    %690 = vmatpush.msra.mxu0 %v673
    %691 = vmatmul.f32.gmra.mxu0 %v236
    %v692 = vpop.f32.mrf.mxu0
    %v693 = vadd.f32 0.0, %v692
    %694 = vmatmul.f32.gmra.mxu0 %v239
    %v695 = vpop.f32.mrf.mxu0
    %v696 = vadd.f32 0.0, %v695
    %697 = vmatmul.f32.gmra.mxu0 %v242
    %v698 = vpop.f32.mrf.mxu0
    %v699 = vadd.f32 0.0, %v698
    %700 = vmatmul.f32.gmra.mxu0 %v245
    %v701 = vpop.f32.mrf.mxu0
    %v702 = vadd.f32 0.0, %v701
    %703 = vmatmul.f32.gmra.mxu0 %v248
    %v704 = vpop.f32.mrf.mxu0
    %v705 = vadd.f32 0.0, %v704
    %706 = vmatmul.f32.gmra.mxu0 %v251
    %v707 = vpop.f32.mrf.mxu0
    %v708 = vadd.f32 0.0, %v707
    %709 = vmatmul.f32.gmra.mxu0 %v254
    %v710 = vpop.f32.mrf.mxu0
    %v711 = vadd.f32 0.0, %v710
    %712 = vmatmul.f32.gmra.mxu0 %v257
    %v713 = vpop.f32.mrf.mxu0
    %v714 = vadd.f32 0.0, %v713
    %715 = vmatmul.f32.gmra.mxu0 %v260
    %v716 = vpop.f32.mrf.mxu0
    %v717 = vadd.f32 0.0, %v716
    %718 = vmatmul.f32.gmra.mxu0 %v263
    %v719 = vpop.f32.mrf.mxu0
    %v720 = vadd.f32 0.0, %v719
    %721 = vmatmul.f32.gmra.mxu0 %v266
    %v722 = vpop.f32.mrf.mxu0
    %v723 = vadd.f32 0.0, %v722
    %724 = vmatmul.f32.gmra.mxu0 %v269
    %v725 = vpop.f32.mrf.mxu0
    %v726 = vadd.f32 0.0, %v725
    %727 = vmatmul.f32.gmra.mxu0 %v272
    %v728 = vpop.f32.mrf.mxu0
    %v729 = vadd.f32 0.0, %v728
    %730 = vmatmul.f32.gmra.mxu0 %v275
    %v731 = vpop.f32.mrf.mxu0
    %v732 = vadd.f32 0.0, %v731
    %733 = vmatmul.f32.gmra.mxu0 %v278
    %v734 = vpop.f32.mrf.mxu0
    %v735 = vadd.f32 0.0, %v734
    %736 = vmatmul.f32.gmra.mxu0 %v281
    %v737 = vpop.f32.mrf.mxu0
    %v738 = vadd.f32 0.0, %v737
    %739 = vdwg.mxu0
    %v740 = vsub.f32 %v580, %v693
    %v741 = vsub.f32 %v581, %v696
    %v742 = vsub.f32 %v582, %v699
    %v743 = vsub.f32 %v583, %v702
    %v744 = vsub.f32 %v584, %v705
    %v745 = vsub.f32 %v585, %v708
    %v746 = vsub.f32 %v586, %v711
    %v747 = vsub.f32 %v587, %v714
    %v748 = vsub.f32 %v588, %v717
    %v749 = vsub.f32 %v589, %v720
    %v750 = vsub.f32 %v590, %v723
    %v751 = vsub.f32 %v591, %v726
    %v752 = vsub.f32 %v592, %v729
    %v753 = vsub.f32 %v593, %v732
    %v754 = vsub.f32 %v594, %v735
    %v755 = vsub.f32 %v595, %v738
    %v756 = vmul.f32 %v740, %v94
    %v757 = vmul.f32 %v741, %v99
    %v758 = vmul.f32 %v742, %v104
    %v759 = vmul.f32 %v743, %v109
    %v760 = vmul.f32 %v744, %v114
    %v761 = vmul.f32 %v745, %v119
    %v762 = vmul.f32 %v746, %v124
    %v763 = vmul.f32 %v747, %v129
    %v764 = vmul.f32 %v748, %v134
    %v765 = vmul.f32 %v749, %v139
    %v766 = vmul.f32 %v750, %v144
    %v767 = vmul.f32 %v751, %v149
    %v768 = vmul.f32 %v752, %v154
    %v769 = vmul.f32 %v753, %v159
    %v770 = vmul.f32 %v754, %v164
    %v771 = vmul.f32 %v755, %v169
    %v772 = vadd.f32 %v693, %v756
    %v773 = vadd.f32 %v696, %v757
    %v774 = vadd.f32 %v699, %v758
    %v775 = vadd.f32 %v702, %v759
    %v776 = vadd.f32 %v705, %v760
    %v777 = vadd.f32 %v708, %v761
    %v778 = vadd.f32 %v711, %v762
    %v779 = vadd.f32 %v714, %v763
    %v780 = vadd.f32 %v717, %v764
    %v781 = vadd.f32 %v720, %v765
    %v782 = vadd.f32 %v723, %v766
    %v783 = vadd.f32 %v726, %v767
    %v784 = vadd.f32 %v729, %v768
    %v785 = vadd.f32 %v732, %v769
    %v786 = vadd.f32 %v735, %v770
    %v787 = vadd.f32 %v738, %v771
    %v788 = vadd.f32 %v772, %v776
    %v789 = vadd.f32 %v773, %v777
    %v790 = vadd.f32 %v774, %v778
    %v791 = vadd.f32 %v775, %v779
    %v792 = vadd.f32 %v788, %v780
    %v793 = vadd.f32 %v789, %v781
    %v794 = vadd.f32 %v790, %v782
    %v795 = vadd.f32 %v791, %v783
    %v796 = vadd.f32 %v792, %v784
    %v797 = vadd.f32 %v793, %v785
    %v798 = vadd.f32 %v794, %v786
    %v799 = vadd.f32 %v795, %v787
    %v800 = vmul.f32 %v636, 0.5
    %v801 = vmul.f32 %v637, 0.5
    %v802 = vmul.f32 %v638, 0.5
    %v803 = vmul.f32 %v639, 0.5
    %v804 = vsub.f32 %v624, %v800
    %v805 = vsub.f32 %v625, %v801
    %v806 = vsub.f32 %v626, %v802
    %v807 = vsub.f32 %v627, %v803
    %v808 = vsub.f32 %v804, %v796
    %v809 = vsub.f32 %v805, %v797
    %v810 = vsub.f32 %v806, %v798
    %v811 = vsub.f32 %v807, %v799
    %v812 = vmul.f32 %v808, %v178
    %v813 = vmul.f32 %v809, %v183
    %v814 = vmul.f32 %v810, %v188
    %v815 = vmul.f32 %v811, %v193
    %v816 = vadd.f32 %v796, %v812
    %v817 = vadd.f32 %v797, %v813
    %v818 = vadd.f32 %v798, %v814
    %v819 = vadd.f32 %v799, %v815
    %vm820 = vcmp.gt.f32.partialorder %v816, 0.5
    %vm821 = vcmp.gt.f32.partialorder %v817, 0.5
    %vm822 = vcmp.gt.f32.partialorder %v818, 0.5
    %vm823 = vcmp.gt.f32.partialorder %v819, 0.5
    %v824 = vsel %vm820, 1, 0
    %v825 = vsel %vm821, 1, 0
    %v826 = vsel %vm822, 1, 0
    %v827 = vsel %vm823, 1, 0
    %v828 = vcvt.s32.f32 %v824
    %v829 = vcvt.s32.f32 %v825
    %v830 = vcvt.s32.f32 %v826
    %v831 = vcvt.s32.f32 %v827
    %832 = vmatpush.msra.mxu0 0.0
    %833 = vmatpush.msra.mxu0 0.0
    %834 = vmatpush.msra.mxu0 0.0
    %835 = vmatpush.msra.mxu0 0.0
    %836 = vmatpush.msra.mxu0 0.0
    %837 = vmatpush.msra.mxu0 0.0
    %838 = vmatpush.msra.mxu0 0.0
    %839 = vmatpush.msra.mxu0 0.0
    %840 = vmatpush.msra.mxu0 0.0
    %841 = vmatpush.msra.mxu0 0.0
    %842 = vmatpush.msra.mxu0 0.0
    %843 = vmatpush.msra.mxu0 0.0
    %844 = vmatpush.msra.mxu0 %v831
    %845 = vmatpush.msra.mxu0 %v830
    %846 = vmatpush.msra.mxu0 %v829
    %847 = vmatpush.msra.mxu0 %v828
    %848 = vmatmul.f32.gmra.mxu0 %v446
    %v849 = vpop.f32.mrf.mxu0
    %v850 = vadd.f32 %v205, %v849
    %851 = vdwg.mxu0
    %v852 = vmul.f32 %v667, 0.5
    %v853 = vsub.f32 %v664, %v852
    %v854 = vsub.f32 %v853, %v850
    %v855 = vmul.f32 %v854, %v199
    %v856 = vadd.f32 %v850, %v855
    %vm857 = vcmp.gt.f32.partialorder %v856, 0.5
    %v858 = vsel %vm857, 1, 0
    %v859 = vcvt.s32.f32 %v858
    %s860 = scalar_lea.vmem [#allocation7], 16
    %861 = vst.msk [vmem:[%s860] sm:$0xff] %vm476, %v856
    %s862 = scalar_lea.vmem %s0, 24
    %v863 = vld [vmem:[%s862] sm:$0x1f]
    %v865 = vsel %vm283, %v863, 0
    %867 = vmatpush.msra.mxu0 0.0
    %868 = vmatpush.msra.mxu0 0.0
    %869 = vmatpush.msra.mxu0 0.0
    %870 = vmatpush.msra.mxu0 0.0
    %871 = vmatpush.msra.mxu0 0.0
    %872 = vmatpush.msra.mxu0 0.0
    %873 = vmatpush.msra.mxu0 0.0
    %874 = vmatpush.msra.mxu0 0.0
    %875 = vmatpush.msra.mxu0 0.0
    %876 = vmatpush.msra.mxu0 0.0
    %877 = vmatpush.msra.mxu0 0.0
    %878 = vmatpush.msra.mxu0 0.0
    %879 = vmatpush.msra.mxu0 0.0
    %880 = vmatpush.msra.mxu0 0.0
    %881 = vmatpush.msra.mxu0 0.0
    %882 = vmatpush.msra.mxu0 %v865
    %883 = vmatmul.f32.gmra.mxu0 %v236
    %v884 = vpop.f32.mrf.mxu0
    %v885 = vadd.f32 0.0, %v884
    %886 = vmatmul.f32.gmra.mxu0 %v239
    %v887 = vpop.f32.mrf.mxu0
    %v888 = vadd.f32 0.0, %v887
    %889 = vmatmul.f32.gmra.mxu0 %v242
    %v890 = vpop.f32.mrf.mxu0
    %v891 = vadd.f32 0.0, %v890
    %892 = vmatmul.f32.gmra.mxu0 %v245
    %v893 = vpop.f32.mrf.mxu0
    %v894 = vadd.f32 0.0, %v893
    %895 = vmatmul.f32.gmra.mxu0 %v248
    %v896 = vpop.f32.mrf.mxu0
    %v897 = vadd.f32 0.0, %v896
    %898 = vmatmul.f32.gmra.mxu0 %v251
    %v899 = vpop.f32.mrf.mxu0
    %v900 = vadd.f32 0.0, %v899
    %901 = vmatmul.f32.gmra.mxu0 %v254
    %v902 = vpop.f32.mrf.mxu0
    %v903 = vadd.f32 0.0, %v902
    %904 = vmatmul.f32.gmra.mxu0 %v257
    %v905 = vpop.f32.mrf.mxu0
    %v906 = vadd.f32 0.0, %v905
    %907 = vmatmul.f32.gmra.mxu0 %v260
    %v908 = vpop.f32.mrf.mxu0
    %v909 = vadd.f32 0.0, %v908
    %910 = vmatmul.f32.gmra.mxu0 %v263
    %v911 = vpop.f32.mrf.mxu0
    %v912 = vadd.f32 0.0, %v911
    %913 = vmatmul.f32.gmra.mxu0 %v266
    %v914 = vpop.f32.mrf.mxu0
    %v915 = vadd.f32 0.0, %v914
    %916 = vmatmul.f32.gmra.mxu0 %v269
    %v917 = vpop.f32.mrf.mxu0
    %v918 = vadd.f32 0.0, %v917
    %919 = vmatmul.f32.gmra.mxu0 %v272
    %v920 = vpop.f32.mrf.mxu0
    %v921 = vadd.f32 0.0, %v920
    %922 = vmatmul.f32.gmra.mxu0 %v275
    %v923 = vpop.f32.mrf.mxu0
    %v924 = vadd.f32 0.0, %v923
    %925 = vmatmul.f32.gmra.mxu0 %v278
    %v926 = vpop.f32.mrf.mxu0
    %v927 = vadd.f32 0.0, %v926
    %928 = vmatmul.f32.gmra.mxu0 %v281
    %v929 = vpop.f32.mrf.mxu0
    %v930 = vadd.f32 0.0, %v929
    %931 = vdwg.mxu0
    %v932 = vsub.f32 %v772, %v885
    %v933 = vsub.f32 %v773, %v888
    %v934 = vsub.f32 %v774, %v891
    %v935 = vsub.f32 %v775, %v894
    %v936 = vsub.f32 %v776, %v897
    %v937 = vsub.f32 %v777, %v900
    %v938 = vsub.f32 %v778, %v903
    %v939 = vsub.f32 %v779, %v906
    %v940 = vsub.f32 %v780, %v909
    %v941 = vsub.f32 %v781, %v912
    %v942 = vsub.f32 %v782, %v915
    %v943 = vsub.f32 %v783, %v918
    %v944 = vsub.f32 %v784, %v921
    %v945 = vsub.f32 %v785, %v924
    %v946 = vsub.f32 %v786, %v927
    %v947 = vsub.f32 %v787, %v930
    %v948 = vmul.f32 %v932, %v94
    %v949 = vmul.f32 %v933, %v99
    %v950 = vmul.f32 %v934, %v104
    %v951 = vmul.f32 %v935, %v109
    %v952 = vmul.f32 %v936, %v114
    %v953 = vmul.f32 %v937, %v119
    %v954 = vmul.f32 %v938, %v124
    %v955 = vmul.f32 %v939, %v129
    %v956 = vmul.f32 %v940, %v134
    %v957 = vmul.f32 %v941, %v139
    %v958 = vmul.f32 %v942, %v144
    %v959 = vmul.f32 %v943, %v149
    %v960 = vmul.f32 %v944, %v154
    %v961 = vmul.f32 %v945, %v159
    %v962 = vmul.f32 %v946, %v164
    %v963 = vmul.f32 %v947, %v169
    %v964 = vadd.f32 %v885, %v948
    %v965 = vadd.f32 %v888, %v949
    %v966 = vadd.f32 %v891, %v950
    %v967 = vadd.f32 %v894, %v951
    %v968 = vadd.f32 %v897, %v952
    %v969 = vadd.f32 %v900, %v953
    %v970 = vadd.f32 %v903, %v954
    %v971 = vadd.f32 %v906, %v955
    %v972 = vadd.f32 %v909, %v956
    %v973 = vadd.f32 %v912, %v957
    %v974 = vadd.f32 %v915, %v958
    %v975 = vadd.f32 %v918, %v959
    %v976 = vadd.f32 %v921, %v960
    %v977 = vadd.f32 %v924, %v961
    %v978 = vadd.f32 %v927, %v962
    %v979 = vadd.f32 %v930, %v963
    %v980 = vadd.f32 %v964, %v968
    %v981 = vadd.f32 %v965, %v969
    %v982 = vadd.f32 %v966, %v970
    %v983 = vadd.f32 %v967, %v971
    %v984 = vadd.f32 %v980, %v972
    %v985 = vadd.f32 %v981, %v973
    %v986 = vadd.f32 %v982, %v974
    %v987 = vadd.f32 %v983, %v975
    %v988 = vadd.f32 %v984, %v976
    %v989 = vadd.f32 %v985, %v977
    %v990 = vadd.f32 %v986, %v978
    %v991 = vadd.f32 %v987, %v979
    %v992 = vmul.f32 %v828, 0.5
    %v993 = vmul.f32 %v829, 0.5
    %v994 = vmul.f32 %v830, 0.5
    %v995 = vmul.f32 %v831, 0.5
    %v996 = vsub.f32 %v816, %v992
    %v997 = vsub.f32 %v817, %v993
    %v998 = vsub.f32 %v818, %v994
    %v999 = vsub.f32 %v819, %v995
    %v1000 = vsub.f32 %v996, %v988
    %v1001 = vsub.f32 %v997, %v989
    %v1002 = vsub.f32 %v998, %v990
    %v1003 = vsub.f32 %v999, %v991
    %v1004 = vmul.f32 %v1000, %v178
    %v1005 = vmul.f32 %v1001, %v183
    %v1006 = vmul.f32 %v1002, %v188
    %v1007 = vmul.f32 %v1003, %v193
    %v1008 = vadd.f32 %v988, %v1004
    %v1009 = vadd.f32 %v989, %v1005
    %v1010 = vadd.f32 %v990, %v1006
    %v1011 = vadd.f32 %v991, %v1007
    %vm1012 = vcmp.gt.f32.partialorder %v1008, 0.5
    %vm1013 = vcmp.gt.f32.partialorder %v1009, 0.5
    %vm1014 = vcmp.gt.f32.partialorder %v1010, 0.5
    %vm1015 = vcmp.gt.f32.partialorder %v1011, 0.5
    %v1016 = vsel %vm1012, 1, 0
    %v1017 = vsel %vm1013, 1, 0
    %v1018 = vsel %vm1014, 1, 0
    %v1019 = vsel %vm1015, 1, 0
    %v1020 = vcvt.s32.f32 %v1016
    %v1021 = vcvt.s32.f32 %v1017
    %v1022 = vcvt.s32.f32 %v1018
    %v1023 = vcvt.s32.f32 %v1019
    %1024 = vmatpush.msra.mxu0 0.0
    %1025 = vmatpush.msra.mxu0 0.0
    %1026 = vmatpush.msra.mxu0 0.0
    %1027 = vmatpush.msra.mxu0 0.0
    %1028 = vmatpush.msra.mxu0 0.0
    %1029 = vmatpush.msra.mxu0 0.0
    %1030 = vmatpush.msra.mxu0 0.0
    %1031 = vmatpush.msra.mxu0 0.0
    %1032 = vmatpush.msra.mxu0 0.0
    %1033 = vmatpush.msra.mxu0 0.0
    %1034 = vmatpush.msra.mxu0 0.0
    %1035 = vmatpush.msra.mxu0 0.0
    %1036 = vmatpush.msra.mxu0 %v1023
    %1037 = vmatpush.msra.mxu0 %v1022
    %1038 = vmatpush.msra.mxu0 %v1021
    %1039 = vmatpush.msra.mxu0 %v1020
    %1040 = vmatmul.f32.gmra.mxu0 %v446
    %v1041 = vpop.f32.mrf.mxu0
    %v1042 = vadd.f32 %v205, %v1041
    %1043 = vdwg.mxu0
    %v1044 = vmul.f32 %v859, 0.5
    %v1045 = vsub.f32 %v856, %v1044
    %v1046 = vsub.f32 %v1045, %v1042
    %v1047 = vmul.f32 %v1046, %v199
    %v1048 = vadd.f32 %v1042, %v1047
    %vm1049 = vcmp.gt.f32.partialorder %v1048, 0.5
    %v1050 = vsel %vm1049, 1, 0
    %v1051 = vcvt.s32.f32 %v1050
    %s1052 = scalar_lea.vmem [#allocation7], 24
    %1053 = vst.msk [vmem:[%s1052] sm:$0xff] %vm476, %v1048
    %s1054 = scalar_lea.vmem %s0, 32
    %v1055 = vld [vmem:[%s1054] sm:$0x1f]
    %v1057 = vsel %vm283, %v1055, 0
    %1059 = vmatpush.msra.mxu0 0.0
    %1060 = vmatpush.msra.mxu0 0.0
    %1061 = vmatpush.msra.mxu0 0.0
    %1062 = vmatpush.msra.mxu0 0.0
    %1063 = vmatpush.msra.mxu0 0.0
    %1064 = vmatpush.msra.mxu0 0.0
    %1065 = vmatpush.msra.mxu0 0.0
    %1066 = vmatpush.msra.mxu0 0.0
    %1067 = vmatpush.msra.mxu0 0.0
    %1068 = vmatpush.msra.mxu0 0.0
    %1069 = vmatpush.msra.mxu0 0.0
    %1070 = vmatpush.msra.mxu0 0.0
    %1071 = vmatpush.msra.mxu0 0.0
    %1072 = vmatpush.msra.mxu0 0.0
    %1073 = vmatpush.msra.mxu0 0.0
    %1074 = vmatpush.msra.mxu0 %v1057
    %1075 = vmatmul.f32.gmra.mxu0 %v236
    %v1076 = vpop.f32.mrf.mxu0
    %v1077 = vadd.f32 0.0, %v1076
    %1078 = vmatmul.f32.gmra.mxu0 %v239
    %v1079 = vpop.f32.mrf.mxu0
    %v1080 = vadd.f32 0.0, %v1079
    %1081 = vmatmul.f32.gmra.mxu0 %v242
    %v1082 = vpop.f32.mrf.mxu0
    %v1083 = vadd.f32 0.0, %v1082
    %1084 = vmatmul.f32.gmra.mxu0 %v245
    %v1085 = vpop.f32.mrf.mxu0
    %v1086 = vadd.f32 0.0, %v1085
    %1087 = vmatmul.f32.gmra.mxu0 %v248
    %v1088 = vpop.f32.mrf.mxu0
    %v1089 = vadd.f32 0.0, %v1088
    %1090 = vmatmul.f32.gmra.mxu0 %v251
    %v1091 = vpop.f32.mrf.mxu0
    %v1092 = vadd.f32 0.0, %v1091
    %1093 = vmatmul.f32.gmra.mxu0 %v254
    %v1094 = vpop.f32.mrf.mxu0
    %v1095 = vadd.f32 0.0, %v1094
    %1096 = vmatmul.f32.gmra.mxu0 %v257
    %v1097 = vpop.f32.mrf.mxu0
    %v1098 = vadd.f32 0.0, %v1097
    %1099 = vmatmul.f32.gmra.mxu0 %v260
    %v1100 = vpop.f32.mrf.mxu0
    %v1101 = vadd.f32 0.0, %v1100
    %1102 = vmatmul.f32.gmra.mxu0 %v263
    %v1103 = vpop.f32.mrf.mxu0
    %v1104 = vadd.f32 0.0, %v1103
    %1105 = vmatmul.f32.gmra.mxu0 %v266
    %v1106 = vpop.f32.mrf.mxu0
    %v1107 = vadd.f32 0.0, %v1106
    %1108 = vmatmul.f32.gmra.mxu0 %v269
    %v1109 = vpop.f32.mrf.mxu0
    %v1110 = vadd.f32 0.0, %v1109
    %1111 = vmatmul.f32.gmra.mxu0 %v272
    %v1112 = vpop.f32.mrf.mxu0
    %v1113 = vadd.f32 0.0, %v1112
    %1114 = vmatmul.f32.gmra.mxu0 %v275
    %v1115 = vpop.f32.mrf.mxu0
    %v1116 = vadd.f32 0.0, %v1115
    %1117 = vmatmul.f32.gmra.mxu0 %v278
    %v1118 = vpop.f32.mrf.mxu0
    %v1119 = vadd.f32 0.0, %v1118
    %1120 = vmatmul.f32.gmra.mxu0 %v281
    %v1121 = vpop.f32.mrf.mxu0
    %v1122 = vadd.f32 0.0, %v1121
    %1123 = vdwg.mxu0
    %v1124 = vsub.f32 %v964, %v1077
    %v1125 = vsub.f32 %v965, %v1080
    %v1126 = vsub.f32 %v966, %v1083
    %v1127 = vsub.f32 %v967, %v1086
    %v1128 = vsub.f32 %v968, %v1089
    %v1129 = vsub.f32 %v969, %v1092
    %v1130 = vsub.f32 %v970, %v1095
    %v1131 = vsub.f32 %v971, %v1098
    %v1132 = vsub.f32 %v972, %v1101
    %v1133 = vsub.f32 %v973, %v1104
    %v1134 = vsub.f32 %v974, %v1107
    %v1135 = vsub.f32 %v975, %v1110
    %v1136 = vsub.f32 %v976, %v1113
    %v1137 = vsub.f32 %v977, %v1116
    %v1138 = vsub.f32 %v978, %v1119
    %v1139 = vsub.f32 %v979, %v1122
    %v1140 = vmul.f32 %v1124, %v94
    %v1141 = vmul.f32 %v1125, %v99
    %v1142 = vmul.f32 %v1126, %v104
    %v1143 = vmul.f32 %v1127, %v109
    %v1144 = vmul.f32 %v1128, %v114
    %v1145 = vmul.f32 %v1129, %v119
    %v1146 = vmul.f32 %v1130, %v124
    %v1147 = vmul.f32 %v1131, %v129
    %v1148 = vmul.f32 %v1132, %v134
    %v1149 = vmul.f32 %v1133, %v139
    %v1150 = vmul.f32 %v1134, %v144
    %v1151 = vmul.f32 %v1135, %v149
    %v1152 = vmul.f32 %v1136, %v154
    %v1153 = vmul.f32 %v1137, %v159
    %v1154 = vmul.f32 %v1138, %v164
    %v1155 = vmul.f32 %v1139, %v169
    %v1156 = vadd.f32 %v1077, %v1140
    %v1157 = vadd.f32 %v1080, %v1141
    %v1158 = vadd.f32 %v1083, %v1142
    %v1159 = vadd.f32 %v1086, %v1143
    %v1160 = vadd.f32 %v1089, %v1144
    %v1161 = vadd.f32 %v1092, %v1145
    %v1162 = vadd.f32 %v1095, %v1146
    %v1163 = vadd.f32 %v1098, %v1147
    %v1164 = vadd.f32 %v1101, %v1148
    %v1165 = vadd.f32 %v1104, %v1149
    %v1166 = vadd.f32 %v1107, %v1150
    %v1167 = vadd.f32 %v1110, %v1151
    %v1168 = vadd.f32 %v1113, %v1152
    %v1169 = vadd.f32 %v1116, %v1153
    %v1170 = vadd.f32 %v1119, %v1154
    %v1171 = vadd.f32 %v1122, %v1155
    %v1172 = vadd.f32 %v1156, %v1160
    %v1173 = vadd.f32 %v1157, %v1161
    %v1174 = vadd.f32 %v1158, %v1162
    %v1175 = vadd.f32 %v1159, %v1163
    %v1176 = vadd.f32 %v1172, %v1164
    %v1177 = vadd.f32 %v1173, %v1165
    %v1178 = vadd.f32 %v1174, %v1166
    %v1179 = vadd.f32 %v1175, %v1167
    %v1180 = vadd.f32 %v1176, %v1168
    %v1181 = vadd.f32 %v1177, %v1169
    %v1182 = vadd.f32 %v1178, %v1170
    %v1183 = vadd.f32 %v1179, %v1171
    %v1184 = vmul.f32 %v1020, 0.5
    %v1185 = vmul.f32 %v1021, 0.5
    %v1186 = vmul.f32 %v1022, 0.5
    %v1187 = vmul.f32 %v1023, 0.5
    %v1188 = vsub.f32 %v1008, %v1184
    %v1189 = vsub.f32 %v1009, %v1185
    %v1190 = vsub.f32 %v1010, %v1186
    %v1191 = vsub.f32 %v1011, %v1187
    %v1192 = vsub.f32 %v1188, %v1180
    %v1193 = vsub.f32 %v1189, %v1181
    %v1194 = vsub.f32 %v1190, %v1182
    %v1195 = vsub.f32 %v1191, %v1183
    %v1196 = vmul.f32 %v1192, %v178
    %v1197 = vmul.f32 %v1193, %v183
    %v1198 = vmul.f32 %v1194, %v188
    %v1199 = vmul.f32 %v1195, %v193
    %v1200 = vadd.f32 %v1180, %v1196
    %v1201 = vadd.f32 %v1181, %v1197
    %v1202 = vadd.f32 %v1182, %v1198
    %v1203 = vadd.f32 %v1183, %v1199
    %vm1204 = vcmp.gt.f32.partialorder %v1200, 0.5
    %vm1205 = vcmp.gt.f32.partialorder %v1201, 0.5
    %vm1206 = vcmp.gt.f32.partialorder %v1202, 0.5
    %vm1207 = vcmp.gt.f32.partialorder %v1203, 0.5
    %v1208 = vsel %vm1204, 1, 0
    %v1209 = vsel %vm1205, 1, 0
    %v1210 = vsel %vm1206, 1, 0
    %v1211 = vsel %vm1207, 1, 0
    %v1212 = vcvt.s32.f32 %v1208
    %v1213 = vcvt.s32.f32 %v1209
    %v1214 = vcvt.s32.f32 %v1210
    %v1215 = vcvt.s32.f32 %v1211
    %1216 = vmatpush.msra.mxu0 0.0
    %1217 = vmatpush.msra.mxu0 0.0
    %1218 = vmatpush.msra.mxu0 0.0
    %1219 = vmatpush.msra.mxu0 0.0
    %1220 = vmatpush.msra.mxu0 0.0
    %1221 = vmatpush.msra.mxu0 0.0
    %1222 = vmatpush.msra.mxu0 0.0
    %1223 = vmatpush.msra.mxu0 0.0
    %1224 = vmatpush.msra.mxu0 0.0
    %1225 = vmatpush.msra.mxu0 0.0
    %1226 = vmatpush.msra.mxu0 0.0
    %1227 = vmatpush.msra.mxu0 0.0
    %1228 = vmatpush.msra.mxu0 %v1215
    %1229 = vmatpush.msra.mxu0 %v1214
    %1230 = vmatpush.msra.mxu0 %v1213
    %1231 = vmatpush.msra.mxu0 %v1212
    %1232 = vmatmul.f32.gmra.mxu0 %v446
    %v1233 = vpop.f32.mrf.mxu0
    %v1234 = vadd.f32 %v205, %v1233
    %1235 = vdwg.mxu0
    %v1236 = vmul.f32 %v1051, 0.5
    %v1237 = vsub.f32 %v1048, %v1236
    %v1238 = vsub.f32 %v1237, %v1234
    %v1239 = vmul.f32 %v1238, %v199
    %v1240 = vadd.f32 %v1234, %v1239
    %vm1241 = vcmp.gt.f32.partialorder %v1240, 0.5
    %v1242 = vsel %vm1241, 1, 0
    %v1243 = vcvt.s32.f32 %v1242
    %s1244 = scalar_lea.vmem [#allocation7], 32
    %1245 = vst.msk [vmem:[%s1244] sm:$0xff] %vm476, %v1240
    %s1246 = scalar_lea.vmem %s0, 40
    %v1247 = vld [vmem:[%s1246] sm:$0x1f]
    %v1249 = vsel %vm283, %v1247, 0
    %1251 = vmatpush.msra.mxu0 0.0
    %1252 = vmatpush.msra.mxu0 0.0
    %1253 = vmatpush.msra.mxu0 0.0
    %1254 = vmatpush.msra.mxu0 0.0
    %1255 = vmatpush.msra.mxu0 0.0
    %1256 = vmatpush.msra.mxu0 0.0
    %1257 = vmatpush.msra.mxu0 0.0
    %1258 = vmatpush.msra.mxu0 0.0
    %1259 = vmatpush.msra.mxu0 0.0
    %1260 = vmatpush.msra.mxu0 0.0
    %1261 = vmatpush.msra.mxu0 0.0
    %1262 = vmatpush.msra.mxu0 0.0
    %1263 = vmatpush.msra.mxu0 0.0
    %1264 = vmatpush.msra.mxu0 0.0
    %1265 = vmatpush.msra.mxu0 0.0
    %1266 = vmatpush.msra.mxu0 %v1249
    %1267 = vmatmul.f32.gmra.mxu0 %v236
    %v1268 = vpop.f32.mrf.mxu0
    %v1269 = vadd.f32 0.0, %v1268
    %1270 = vmatmul.f32.gmra.mxu0 %v239
    %v1271 = vpop.f32.mrf.mxu0
    %v1272 = vadd.f32 0.0, %v1271
    %1273 = vmatmul.f32.gmra.mxu0 %v242
    %v1274 = vpop.f32.mrf.mxu0
    %v1275 = vadd.f32 0.0, %v1274
    %1276 = vmatmul.f32.gmra.mxu0 %v245
    %v1277 = vpop.f32.mrf.mxu0
    %v1278 = vadd.f32 0.0, %v1277
    %1279 = vmatmul.f32.gmra.mxu0 %v248
    %v1280 = vpop.f32.mrf.mxu0
    %v1281 = vadd.f32 0.0, %v1280
    %1282 = vmatmul.f32.gmra.mxu0 %v251
    %v1283 = vpop.f32.mrf.mxu0
    %v1284 = vadd.f32 0.0, %v1283
    %1285 = vmatmul.f32.gmra.mxu0 %v254
    %v1286 = vpop.f32.mrf.mxu0
    %v1287 = vadd.f32 0.0, %v1286
    %1288 = vmatmul.f32.gmra.mxu0 %v257
    %v1289 = vpop.f32.mrf.mxu0
    %v1290 = vadd.f32 0.0, %v1289
    %1291 = vmatmul.f32.gmra.mxu0 %v260
    %v1292 = vpop.f32.mrf.mxu0
    %v1293 = vadd.f32 0.0, %v1292
    %1294 = vmatmul.f32.gmra.mxu0 %v263
    %v1295 = vpop.f32.mrf.mxu0
    %v1296 = vadd.f32 0.0, %v1295
    %1297 = vmatmul.f32.gmra.mxu0 %v266
    %v1298 = vpop.f32.mrf.mxu0
    %v1299 = vadd.f32 0.0, %v1298
    %1300 = vmatmul.f32.gmra.mxu0 %v269
    %v1301 = vpop.f32.mrf.mxu0
    %v1302 = vadd.f32 0.0, %v1301
    %1303 = vmatmul.f32.gmra.mxu0 %v272
    %v1304 = vpop.f32.mrf.mxu0
    %v1305 = vadd.f32 0.0, %v1304
    %1306 = vmatmul.f32.gmra.mxu0 %v275
    %v1307 = vpop.f32.mrf.mxu0
    %v1308 = vadd.f32 0.0, %v1307
    %1309 = vmatmul.f32.gmra.mxu0 %v278
    %v1310 = vpop.f32.mrf.mxu0
    %v1311 = vadd.f32 0.0, %v1310
    %1312 = vmatmul.f32.gmra.mxu0 %v281
    %v1313 = vpop.f32.mrf.mxu0
    %v1314 = vadd.f32 0.0, %v1313
    %1315 = vdwg.mxu0
    %v1316 = vsub.f32 %v1156, %v1269
    %v1317 = vsub.f32 %v1157, %v1272
    %v1318 = vsub.f32 %v1158, %v1275
    %v1319 = vsub.f32 %v1159, %v1278
    %v1320 = vsub.f32 %v1160, %v1281
    %v1321 = vsub.f32 %v1161, %v1284
    %v1322 = vsub.f32 %v1162, %v1287
    %v1323 = vsub.f32 %v1163, %v1290
    %v1324 = vsub.f32 %v1164, %v1293
    %v1325 = vsub.f32 %v1165, %v1296
    %v1326 = vsub.f32 %v1166, %v1299
    %v1327 = vsub.f32 %v1167, %v1302
    %v1328 = vsub.f32 %v1168, %v1305
    %v1329 = vsub.f32 %v1169, %v1308
    %v1330 = vsub.f32 %v1170, %v1311
    %v1331 = vsub.f32 %v1171, %v1314
    %v1332 = vmul.f32 %v1316, %v94
    %v1333 = vmul.f32 %v1317, %v99
    %v1334 = vmul.f32 %v1318, %v104
    %v1335 = vmul.f32 %v1319, %v109
    %v1336 = vmul.f32 %v1320, %v114
    %v1337 = vmul.f32 %v1321, %v119
    %v1338 = vmul.f32 %v1322, %v124
    %v1339 = vmul.f32 %v1323, %v129
    %v1340 = vmul.f32 %v1324, %v134
    %v1341 = vmul.f32 %v1325, %v139
    %v1342 = vmul.f32 %v1326, %v144
    %v1343 = vmul.f32 %v1327, %v149
    %v1344 = vmul.f32 %v1328, %v154
    %v1345 = vmul.f32 %v1329, %v159
    %v1346 = vmul.f32 %v1330, %v164
    %v1347 = vmul.f32 %v1331, %v169
    %v1348 = vadd.f32 %v1269, %v1332
    %v1349 = vadd.f32 %v1272, %v1333
    %v1350 = vadd.f32 %v1275, %v1334
    %v1351 = vadd.f32 %v1278, %v1335
    %v1352 = vadd.f32 %v1281, %v1336
    %v1353 = vadd.f32 %v1284, %v1337
    %v1354 = vadd.f32 %v1287, %v1338
    %v1355 = vadd.f32 %v1290, %v1339
    %v1356 = vadd.f32 %v1293, %v1340
    %v1357 = vadd.f32 %v1296, %v1341
    %v1358 = vadd.f32 %v1299, %v1342
    %v1359 = vadd.f32 %v1302, %v1343
    %v1360 = vadd.f32 %v1305, %v1344
    %v1361 = vadd.f32 %v1308, %v1345
    %v1362 = vadd.f32 %v1311, %v1346
    %v1363 = vadd.f32 %v1314, %v1347
    %v1364 = vadd.f32 %v1348, %v1352
    %v1365 = vadd.f32 %v1349, %v1353
    %v1366 = vadd.f32 %v1350, %v1354
    %v1367 = vadd.f32 %v1351, %v1355
    %v1368 = vadd.f32 %v1364, %v1356
    %v1369 = vadd.f32 %v1365, %v1357
    %v1370 = vadd.f32 %v1366, %v1358
    %v1371 = vadd.f32 %v1367, %v1359
    %v1372 = vadd.f32 %v1368, %v1360
    %v1373 = vadd.f32 %v1369, %v1361
    %v1374 = vadd.f32 %v1370, %v1362
    %v1375 = vadd.f32 %v1371, %v1363
    %v1376 = vmul.f32 %v1212, 0.5
    %v1377 = vmul.f32 %v1213, 0.5
    %v1378 = vmul.f32 %v1214, 0.5
    %v1379 = vmul.f32 %v1215, 0.5
    %v1380 = vsub.f32 %v1200, %v1376
    %v1381 = vsub.f32 %v1201, %v1377
    %v1382 = vsub.f32 %v1202, %v1378
    %v1383 = vsub.f32 %v1203, %v1379
    %v1384 = vsub.f32 %v1380, %v1372
    %v1385 = vsub.f32 %v1381, %v1373
    %v1386 = vsub.f32 %v1382, %v1374
    %v1387 = vsub.f32 %v1383, %v1375
    %v1388 = vmul.f32 %v1384, %v178
    %v1389 = vmul.f32 %v1385, %v183
    %v1390 = vmul.f32 %v1386, %v188
    %v1391 = vmul.f32 %v1387, %v193
    %v1392 = vadd.f32 %v1372, %v1388
    %v1393 = vadd.f32 %v1373, %v1389
    %v1394 = vadd.f32 %v1374, %v1390
    %v1395 = vadd.f32 %v1375, %v1391
    %vm1396 = vcmp.gt.f32.partialorder %v1392, 0.5
    %vm1397 = vcmp.gt.f32.partialorder %v1393, 0.5
    %vm1398 = vcmp.gt.f32.partialorder %v1394, 0.5
    %vm1399 = vcmp.gt.f32.partialorder %v1395, 0.5
    %v1400 = vsel %vm1396, 1, 0
    %v1401 = vsel %vm1397, 1, 0
    %v1402 = vsel %vm1398, 1, 0
    %v1403 = vsel %vm1399, 1, 0
    %v1404 = vcvt.s32.f32 %v1400
    %v1405 = vcvt.s32.f32 %v1401
    %v1406 = vcvt.s32.f32 %v1402
    %v1407 = vcvt.s32.f32 %v1403
    %1408 = vmatpush.msra.mxu0 0.0
    %1409 = vmatpush.msra.mxu0 0.0
    %1410 = vmatpush.msra.mxu0 0.0
    %1411 = vmatpush.msra.mxu0 0.0
    %1412 = vmatpush.msra.mxu0 0.0
    %1413 = vmatpush.msra.mxu0 0.0
    %1414 = vmatpush.msra.mxu0 0.0
    %1415 = vmatpush.msra.mxu0 0.0
    %1416 = vmatpush.msra.mxu0 0.0
    %1417 = vmatpush.msra.mxu0 0.0
    %1418 = vmatpush.msra.mxu0 0.0
    %1419 = vmatpush.msra.mxu0 0.0
    %1420 = vmatpush.msra.mxu0 %v1407
    %1421 = vmatpush.msra.mxu0 %v1406
    %1422 = vmatpush.msra.mxu0 %v1405
    %1423 = vmatpush.msra.mxu0 %v1404
    %1424 = vmatmul.f32.gmra.mxu0 %v446
    %v1425 = vpop.f32.mrf.mxu0
    %v1426 = vadd.f32 %v205, %v1425
    %1427 = vdwg.mxu0
    %v1428 = vmul.f32 %v1243, 0.5
    %v1429 = vsub.f32 %v1240, %v1428
    %v1430 = vsub.f32 %v1429, %v1426
    %v1431 = vmul.f32 %v1430, %v199
    %v1432 = vadd.f32 %v1426, %v1431
    %vm1433 = vcmp.gt.f32.partialorder %v1432, 0.5
    %v1434 = vsel %vm1433, 1, 0
    %v1435 = vcvt.s32.f32 %v1434
    %s1436 = scalar_lea.vmem [#allocation7], 40
    %1437 = vst.msk [vmem:[%s1436] sm:$0xff] %vm476, %v1432
    %s1438 = scalar_lea.vmem %s0, 48
    %v1439 = vld [vmem:[%s1438] sm:$0x1f]
    %v1441 = vsel %vm283, %v1439, 0
    %1443 = vmatpush.msra.mxu0 0.0
    %1444 = vmatpush.msra.mxu0 0.0
    %1445 = vmatpush.msra.mxu0 0.0
    %1446 = vmatpush.msra.mxu0 0.0
    %1447 = vmatpush.msra.mxu0 0.0
    %1448 = vmatpush.msra.mxu0 0.0
    %1449 = vmatpush.msra.mxu0 0.0
    %1450 = vmatpush.msra.mxu0 0.0
    %1451 = vmatpush.msra.mxu0 0.0
    %1452 = vmatpush.msra.mxu0 0.0
    %1453 = vmatpush.msra.mxu0 0.0
    %1454 = vmatpush.msra.mxu0 0.0
    %1455 = vmatpush.msra.mxu0 0.0
    %1456 = vmatpush.msra.mxu0 0.0
    %1457 = vmatpush.msra.mxu0 0.0
    %1458 = vmatpush.msra.mxu0 %v1441
    %1459 = vmatmul.f32.gmra.mxu0 %v236
    %v1460 = vpop.f32.mrf.mxu0
    %v1461 = vadd.f32 0.0, %v1460
    %1462 = vmatmul.f32.gmra.mxu0 %v239
    %v1463 = vpop.f32.mrf.mxu0
    %v1464 = vadd.f32 0.0, %v1463
    %1465 = vmatmul.f32.gmra.mxu0 %v242
    %v1466 = vpop.f32.mrf.mxu0
    %v1467 = vadd.f32 0.0, %v1466
    %1468 = vmatmul.f32.gmra.mxu0 %v245
    %v1469 = vpop.f32.mrf.mxu0
    %v1470 = vadd.f32 0.0, %v1469
    %1471 = vmatmul.f32.gmra.mxu0 %v248
    %v1472 = vpop.f32.mrf.mxu0
    %v1473 = vadd.f32 0.0, %v1472
    %1474 = vmatmul.f32.gmra.mxu0 %v251
    %v1475 = vpop.f32.mrf.mxu0
    %v1476 = vadd.f32 0.0, %v1475
    %1477 = vmatmul.f32.gmra.mxu0 %v254
    %v1478 = vpop.f32.mrf.mxu0
    %v1479 = vadd.f32 0.0, %v1478
    %1480 = vmatmul.f32.gmra.mxu0 %v257
    %v1481 = vpop.f32.mrf.mxu0
    %v1482 = vadd.f32 0.0, %v1481
    %1483 = vmatmul.f32.gmra.mxu0 %v260
    %v1484 = vpop.f32.mrf.mxu0
    %v1485 = vadd.f32 0.0, %v1484
    %1486 = vmatmul.f32.gmra.mxu0 %v263
    %v1487 = vpop.f32.mrf.mxu0
    %v1488 = vadd.f32 0.0, %v1487
    %1489 = vmatmul.f32.gmra.mxu0 %v266
    %v1490 = vpop.f32.mrf.mxu0
    %v1491 = vadd.f32 0.0, %v1490
    %1492 = vmatmul.f32.gmra.mxu0 %v269
    %v1493 = vpop.f32.mrf.mxu0
    %v1494 = vadd.f32 0.0, %v1493
    %1495 = vmatmul.f32.gmra.mxu0 %v272
    %v1496 = vpop.f32.mrf.mxu0
    %v1497 = vadd.f32 0.0, %v1496
    %1498 = vmatmul.f32.gmra.mxu0 %v275
    %v1499 = vpop.f32.mrf.mxu0
    %v1500 = vadd.f32 0.0, %v1499
    %1501 = vmatmul.f32.gmra.mxu0 %v278
    %v1502 = vpop.f32.mrf.mxu0
    %v1503 = vadd.f32 0.0, %v1502
    %1504 = vmatmul.f32.gmra.mxu0 %v281
    %v1505 = vpop.f32.mrf.mxu0
    %v1506 = vadd.f32 0.0, %v1505
    %1507 = vdwg.mxu0
    %v1508 = vsub.f32 %v1348, %v1461
    %v1509 = vsub.f32 %v1349, %v1464
    %v1510 = vsub.f32 %v1350, %v1467
    %v1511 = vsub.f32 %v1351, %v1470
    %v1512 = vsub.f32 %v1352, %v1473
    %v1513 = vsub.f32 %v1353, %v1476
    %v1514 = vsub.f32 %v1354, %v1479
    %v1515 = vsub.f32 %v1355, %v1482
    %v1516 = vsub.f32 %v1356, %v1485
    %v1517 = vsub.f32 %v1357, %v1488
    %v1518 = vsub.f32 %v1358, %v1491
    %v1519 = vsub.f32 %v1359, %v1494
    %v1520 = vsub.f32 %v1360, %v1497
    %v1521 = vsub.f32 %v1361, %v1500
    %v1522 = vsub.f32 %v1362, %v1503
    %v1523 = vsub.f32 %v1363, %v1506
    %v1524 = vmul.f32 %v1508, %v94
    %v1525 = vmul.f32 %v1509, %v99
    %v1526 = vmul.f32 %v1510, %v104
    %v1527 = vmul.f32 %v1511, %v109
    %v1528 = vmul.f32 %v1512, %v114
    %v1529 = vmul.f32 %v1513, %v119
    %v1530 = vmul.f32 %v1514, %v124
    %v1531 = vmul.f32 %v1515, %v129
    %v1532 = vmul.f32 %v1516, %v134
    %v1533 = vmul.f32 %v1517, %v139
    %v1534 = vmul.f32 %v1518, %v144
    %v1535 = vmul.f32 %v1519, %v149
    %v1536 = vmul.f32 %v1520, %v154
    %v1537 = vmul.f32 %v1521, %v159
    %v1538 = vmul.f32 %v1522, %v164
    %v1539 = vmul.f32 %v1523, %v169
    %v1540 = vadd.f32 %v1461, %v1524
    %v1541 = vadd.f32 %v1464, %v1525
    %v1542 = vadd.f32 %v1467, %v1526
    %v1543 = vadd.f32 %v1470, %v1527
    %v1544 = vadd.f32 %v1473, %v1528
    %v1545 = vadd.f32 %v1476, %v1529
    %v1546 = vadd.f32 %v1479, %v1530
    %v1547 = vadd.f32 %v1482, %v1531
    %v1548 = vadd.f32 %v1485, %v1532
    %v1549 = vadd.f32 %v1488, %v1533
    %v1550 = vadd.f32 %v1491, %v1534
    %v1551 = vadd.f32 %v1494, %v1535
    %v1552 = vadd.f32 %v1497, %v1536
    %v1553 = vadd.f32 %v1500, %v1537
    %v1554 = vadd.f32 %v1503, %v1538
    %v1555 = vadd.f32 %v1506, %v1539
    %v1556 = vadd.f32 %v1540, %v1544
    %v1557 = vadd.f32 %v1541, %v1545
    %v1558 = vadd.f32 %v1542, %v1546
    %v1559 = vadd.f32 %v1543, %v1547
    %v1560 = vadd.f32 %v1556, %v1548
    %v1561 = vadd.f32 %v1557, %v1549
    %v1562 = vadd.f32 %v1558, %v1550
    %v1563 = vadd.f32 %v1559, %v1551
    %v1564 = vadd.f32 %v1560, %v1552
    %v1565 = vadd.f32 %v1561, %v1553
    %v1566 = vadd.f32 %v1562, %v1554
    %v1567 = vadd.f32 %v1563, %v1555
    %v1568 = vmul.f32 %v1404, 0.5
    %v1569 = vmul.f32 %v1405, 0.5
    %v1570 = vmul.f32 %v1406, 0.5
    %v1571 = vmul.f32 %v1407, 0.5
    %v1572 = vsub.f32 %v1392, %v1568
    %v1573 = vsub.f32 %v1393, %v1569
    %v1574 = vsub.f32 %v1394, %v1570
    %v1575 = vsub.f32 %v1395, %v1571
    %v1576 = vsub.f32 %v1572, %v1564
    %v1577 = vsub.f32 %v1573, %v1565
    %v1578 = vsub.f32 %v1574, %v1566
    %v1579 = vsub.f32 %v1575, %v1567
    %v1580 = vmul.f32 %v1576, %v178
    %v1581 = vmul.f32 %v1577, %v183
    %v1582 = vmul.f32 %v1578, %v188
    %v1583 = vmul.f32 %v1579, %v193
    %v1584 = vadd.f32 %v1564, %v1580
    %v1585 = vadd.f32 %v1565, %v1581
    %v1586 = vadd.f32 %v1566, %v1582
    %v1587 = vadd.f32 %v1567, %v1583
    %vm1588 = vcmp.gt.f32.partialorder %v1584, 0.5
    %vm1589 = vcmp.gt.f32.partialorder %v1585, 0.5
    %vm1590 = vcmp.gt.f32.partialorder %v1586, 0.5
    %vm1591 = vcmp.gt.f32.partialorder %v1587, 0.5
    %v1592 = vsel %vm1588, 1, 0
    %v1593 = vsel %vm1589, 1, 0
    %v1594 = vsel %vm1590, 1, 0
    %v1595 = vsel %vm1591, 1, 0
    %v1596 = vcvt.s32.f32 %v1592
    %v1597 = vcvt.s32.f32 %v1593
    %v1598 = vcvt.s32.f32 %v1594
    %v1599 = vcvt.s32.f32 %v1595
    %1600 = vmatpush.msra.mxu0 0.0
    %1601 = vmatpush.msra.mxu0 0.0
    %1602 = vmatpush.msra.mxu0 0.0
    %1603 = vmatpush.msra.mxu0 0.0
    %1604 = vmatpush.msra.mxu0 0.0
    %1605 = vmatpush.msra.mxu0 0.0
    %1606 = vmatpush.msra.mxu0 0.0
    %1607 = vmatpush.msra.mxu0 0.0
    %1608 = vmatpush.msra.mxu0 0.0
    %1609 = vmatpush.msra.mxu0 0.0
    %1610 = vmatpush.msra.mxu0 0.0
    %1611 = vmatpush.msra.mxu0 0.0
    %1612 = vmatpush.msra.mxu0 %v1599
    %1613 = vmatpush.msra.mxu0 %v1598
    %1614 = vmatpush.msra.mxu0 %v1597
    %1615 = vmatpush.msra.mxu0 %v1596
    %1616 = vmatmul.f32.gmra.mxu0 %v446
    %v1617 = vpop.f32.mrf.mxu0
    %v1618 = vadd.f32 %v205, %v1617
    %1619 = vdwg.mxu0
    %v1620 = vmul.f32 %v1435, 0.5
    %v1621 = vsub.f32 %v1432, %v1620
    %v1622 = vsub.f32 %v1621, %v1618
    %v1623 = vmul.f32 %v1622, %v199
    %v1624 = vadd.f32 %v1618, %v1623
    %vm1625 = vcmp.gt.f32.partialorder %v1624, 0.5
    %v1626 = vsel %vm1625, 1, 0
    %v1627 = vcvt.s32.f32 %v1626
    %s1628 = scalar_lea.vmem [#allocation7], 48
    %1629 = vst.msk [vmem:[%s1628] sm:$0xff] %vm476, %v1624
    %s1630 = scalar_lea.vmem %s0, 56
    %v1631 = vld [vmem:[%s1630] sm:$0x1f]
    %v1633 = vsel %vm283, %v1631, 0
    %1635 = vmatpush.msra.mxu0 0.0
    %1636 = vmatpush.msra.mxu0 0.0
    %1637 = vmatpush.msra.mxu0 0.0
    %1638 = vmatpush.msra.mxu0 0.0
    %1639 = vmatpush.msra.mxu0 0.0
    %1640 = vmatpush.msra.mxu0 0.0
    %1641 = vmatpush.msra.mxu0 0.0
    %1642 = vmatpush.msra.mxu0 0.0
    %1643 = vmatpush.msra.mxu0 0.0
    %1644 = vmatpush.msra.mxu0 0.0
    %1645 = vmatpush.msra.mxu0 0.0
    %1646 = vmatpush.msra.mxu0 0.0
    %1647 = vmatpush.msra.mxu0 0.0
    %1648 = vmatpush.msra.mxu0 0.0
    %1649 = vmatpush.msra.mxu0 0.0
    %1650 = vmatpush.msra.mxu0 %v1633
    %1651 = vmatmul.f32.gmra.mxu0 %v236
    %v1652 = vpop.f32.mrf.mxu0
    %v1653 = vadd.f32 0.0, %v1652
    %1654 = vmatmul.f32.gmra.mxu0 %v239
    %v1655 = vpop.f32.mrf.mxu0
    %v1656 = vadd.f32 0.0, %v1655
    %1657 = vmatmul.f32.gmra.mxu0 %v242
    %v1658 = vpop.f32.mrf.mxu0
    %v1659 = vadd.f32 0.0, %v1658
    %1660 = vmatmul.f32.gmra.mxu0 %v245
    %v1661 = vpop.f32.mrf.mxu0
    %v1662 = vadd.f32 0.0, %v1661
    %1663 = vmatmul.f32.gmra.mxu0 %v248
    %v1664 = vpop.f32.mrf.mxu0
    %v1665 = vadd.f32 0.0, %v1664
    %1666 = vmatmul.f32.gmra.mxu0 %v251
    %v1667 = vpop.f32.mrf.mxu0
    %v1668 = vadd.f32 0.0, %v1667
    %1669 = vmatmul.f32.gmra.mxu0 %v254
    %v1670 = vpop.f32.mrf.mxu0
    %v1671 = vadd.f32 0.0, %v1670
    %1672 = vmatmul.f32.gmra.mxu0 %v257
    %v1673 = vpop.f32.mrf.mxu0
    %v1674 = vadd.f32 0.0, %v1673
    %1675 = vmatmul.f32.gmra.mxu0 %v260
    %v1676 = vpop.f32.mrf.mxu0
    %v1677 = vadd.f32 0.0, %v1676
    %1678 = vmatmul.f32.gmra.mxu0 %v263
    %v1679 = vpop.f32.mrf.mxu0
    %v1680 = vadd.f32 0.0, %v1679
    %1681 = vmatmul.f32.gmra.mxu0 %v266
    %v1682 = vpop.f32.mrf.mxu0
    %v1683 = vadd.f32 0.0, %v1682
    %1684 = vmatmul.f32.gmra.mxu0 %v269
    %v1685 = vpop.f32.mrf.mxu0
    %v1686 = vadd.f32 0.0, %v1685
    %1687 = vmatmul.f32.gmra.mxu0 %v272
    %v1688 = vpop.f32.mrf.mxu0
    %v1689 = vadd.f32 0.0, %v1688
    %1690 = vmatmul.f32.gmra.mxu0 %v275
    %v1691 = vpop.f32.mrf.mxu0
    %v1692 = vadd.f32 0.0, %v1691
    %1693 = vmatmul.f32.gmra.mxu0 %v278
    %v1694 = vpop.f32.mrf.mxu0
    %v1695 = vadd.f32 0.0, %v1694
    %1696 = vmatmul.f32.gmra.mxu0 %v281
    %v1697 = vpop.f32.mrf.mxu0
    %v1698 = vadd.f32 0.0, %v1697
    %1699 = vdwg.mxu0
    %v1700 = vsub.f32 %v1540, %v1653
    %v1701 = vsub.f32 %v1541, %v1656
    %v1702 = vsub.f32 %v1542, %v1659
    %v1703 = vsub.f32 %v1543, %v1662
    %v1704 = vsub.f32 %v1544, %v1665
    %v1705 = vsub.f32 %v1545, %v1668
    %v1706 = vsub.f32 %v1546, %v1671
    %v1707 = vsub.f32 %v1547, %v1674
    %v1708 = vsub.f32 %v1548, %v1677
    %v1709 = vsub.f32 %v1549, %v1680
    %v1710 = vsub.f32 %v1550, %v1683
    %v1711 = vsub.f32 %v1551, %v1686
    %v1712 = vsub.f32 %v1552, %v1689
    %v1713 = vsub.f32 %v1553, %v1692
    %v1714 = vsub.f32 %v1554, %v1695
    %v1715 = vsub.f32 %v1555, %v1698
    %v1716 = vmul.f32 %v1700, %v94
    %v1717 = vmul.f32 %v1701, %v99
    %v1718 = vmul.f32 %v1702, %v104
    %v1719 = vmul.f32 %v1703, %v109
    %v1720 = vmul.f32 %v1704, %v114
    %v1721 = vmul.f32 %v1705, %v119
    %v1722 = vmul.f32 %v1706, %v124
    %v1723 = vmul.f32 %v1707, %v129
    %v1724 = vmul.f32 %v1708, %v134
    %v1725 = vmul.f32 %v1709, %v139
    %v1726 = vmul.f32 %v1710, %v144
    %v1727 = vmul.f32 %v1711, %v149
    %v1728 = vmul.f32 %v1712, %v154
    %v1729 = vmul.f32 %v1713, %v159
    %v1730 = vmul.f32 %v1714, %v164
    %v1731 = vmul.f32 %v1715, %v169
    %v1732 = vadd.f32 %v1653, %v1716
    %v1733 = vadd.f32 %v1656, %v1717
    %v1734 = vadd.f32 %v1659, %v1718
    %v1735 = vadd.f32 %v1662, %v1719
    %v1736 = vadd.f32 %v1665, %v1720
    %v1737 = vadd.f32 %v1668, %v1721
    %v1738 = vadd.f32 %v1671, %v1722
    %v1739 = vadd.f32 %v1674, %v1723
    %v1740 = vadd.f32 %v1677, %v1724
    %v1741 = vadd.f32 %v1680, %v1725
    %v1742 = vadd.f32 %v1683, %v1726
    %v1743 = vadd.f32 %v1686, %v1727
    %v1744 = vadd.f32 %v1689, %v1728
    %v1745 = vadd.f32 %v1692, %v1729
    %v1746 = vadd.f32 %v1695, %v1730
    %v1747 = vadd.f32 %v1698, %v1731
    %v1748 = vadd.f32 %v1732, %v1736
    %v1749 = vadd.f32 %v1733, %v1737
    %v1750 = vadd.f32 %v1734, %v1738
    %v1751 = vadd.f32 %v1735, %v1739
    %v1752 = vadd.f32 %v1748, %v1740
    %v1753 = vadd.f32 %v1749, %v1741
    %v1754 = vadd.f32 %v1750, %v1742
    %v1755 = vadd.f32 %v1751, %v1743
    %v1756 = vadd.f32 %v1752, %v1744
    %v1757 = vadd.f32 %v1753, %v1745
    %v1758 = vadd.f32 %v1754, %v1746
    %v1759 = vadd.f32 %v1755, %v1747
    %v1760 = vmul.f32 %v1596, 0.5
    %v1761 = vmul.f32 %v1597, 0.5
    %v1762 = vmul.f32 %v1598, 0.5
    %v1763 = vmul.f32 %v1599, 0.5
    %v1764 = vsub.f32 %v1584, %v1760
    %v1765 = vsub.f32 %v1585, %v1761
    %v1766 = vsub.f32 %v1586, %v1762
    %v1767 = vsub.f32 %v1587, %v1763
    %v1768 = vsub.f32 %v1764, %v1756
    %v1769 = vsub.f32 %v1765, %v1757
    %v1770 = vsub.f32 %v1766, %v1758
    %v1771 = vsub.f32 %v1767, %v1759
    %v1772 = vmul.f32 %v1768, %v178
    %v1773 = vmul.f32 %v1769, %v183
    %v1774 = vmul.f32 %v1770, %v188
    %v1775 = vmul.f32 %v1771, %v193
    %v1776 = vadd.f32 %v1756, %v1772
    %v1777 = vadd.f32 %v1757, %v1773
    %v1778 = vadd.f32 %v1758, %v1774
    %v1779 = vadd.f32 %v1759, %v1775
    %vm1780 = vcmp.gt.f32.partialorder %v1776, 0.5
    %vm1781 = vcmp.gt.f32.partialorder %v1777, 0.5
    %vm1782 = vcmp.gt.f32.partialorder %v1778, 0.5
    %vm1783 = vcmp.gt.f32.partialorder %v1779, 0.5
    %v1784 = vsel %vm1780, 1, 0
    %v1785 = vsel %vm1781, 1, 0
    %v1786 = vsel %vm1782, 1, 0
    %v1787 = vsel %vm1783, 1, 0
    %v1788 = vcvt.s32.f32 %v1784
    %v1789 = vcvt.s32.f32 %v1785
    %v1790 = vcvt.s32.f32 %v1786
    %v1791 = vcvt.s32.f32 %v1787
    %1792 = vmatpush.msra.mxu0 0.0
    %1793 = vmatpush.msra.mxu0 0.0
    %1794 = vmatpush.msra.mxu0 0.0
    %1795 = vmatpush.msra.mxu0 0.0
    %1796 = vmatpush.msra.mxu0 0.0
    %1797 = vmatpush.msra.mxu0 0.0
    %1798 = vmatpush.msra.mxu0 0.0
    %1799 = vmatpush.msra.mxu0 0.0
    %1800 = vmatpush.msra.mxu0 0.0
    %1801 = vmatpush.msra.mxu0 0.0
    %1802 = vmatpush.msra.mxu0 0.0
    %1803 = vmatpush.msra.mxu0 0.0
    %1804 = vmatpush.msra.mxu0 %v1791
    %1805 = vmatpush.msra.mxu0 %v1790
    %1806 = vmatpush.msra.mxu0 %v1789
    %1807 = vmatpush.msra.mxu0 %v1788
    %1808 = vmatmul.f32.gmra.mxu0 %v446
    %v1809 = vpop.f32.mrf.mxu0
    %v1810 = vadd.f32 %v205, %v1809
    %1811 = vdwg.mxu0
    %v1812 = vmul.f32 %v1627, 0.5
    %v1813 = vsub.f32 %v1624, %v1812
    %v1814 = vsub.f32 %v1813, %v1810
    %v1815 = vmul.f32 %v1814, %v199
    %v1816 = vadd.f32 %v1810, %v1815
    %vm1817 = vcmp.gt.f32.partialorder %v1816, 0.5
    %v1818 = vsel %vm1817, 1, 0
    %v1819 = vcvt.s32.f32 %v1818
    %s1820 = scalar_lea.vmem [#allocation7], 56
    %1821 = vst.msk [vmem:[%s1820] sm:$0xff] %vm476, %v1816
    %1822 = vst.msk [vmem:[#allocation2] sm:$0xff] %vm476, %v1732
    %1823 = vst.msk [vmem:[#allocation2 + $0x8] sm:$0xff] %vm476, %v1733
    %1824 = vst.msk [vmem:[#allocation2 + $0x10] sm:$0xff] %vm476, %v1734
    %1825 = vst.msk [vmem:[#allocation2 + $0x18] sm:$0xff] %vm476, %v1735
    %1826 = vst.msk [vmem:[#allocation2 + $0x20] sm:$0xff] %vm476, %v1736
    %1827 = vst.msk [vmem:[#allocation2 + $0x28] sm:$0xff] %vm476, %v1737
    %1828 = vst.msk [vmem:[#allocation2 + $0x30] sm:$0xff] %vm476, %v1738
    %1829 = vst.msk [vmem:[#allocation2 + $0x38] sm:$0xff] %vm476, %v1739
    %1830 = vst.msk [vmem:[#allocation2 + $0x40] sm:$0xff] %vm476, %v1740
    %1831 = vst.msk [vmem:[#allocation2 + $0x48] sm:$0xff] %vm476, %v1741
    %1832 = vst.msk [vmem:[#allocation2 + $0x50] sm:$0xff] %vm476, %v1742
    %1833 = vst.msk [vmem:[#allocation2 + $0x58] sm:$0xff] %vm476, %v1743
    %1834 = vst.msk [vmem:[#allocation2 + $0x60] sm:$0xff] %vm476, %v1744
    %1835 = vst.msk [vmem:[#allocation2 + $0x68] sm:$0xff] %vm476, %v1745
    %1836 = vst.msk [vmem:[#allocation2 + $0x70] sm:$0xff] %vm476, %v1746
    %1837 = vst.msk [vmem:[#allocation2 + $0x78] sm:$0xff] %vm476, %v1747
    %1838 = vst.msk [vmem:[#allocation3] sm:$0xff] %vm476, %v1776
    %1839 = vst.msk [vmem:[#allocation3 + $0x8] sm:$0xff] %vm476, %v1777
    %1840 = vst.msk [vmem:[#allocation3 + $0x10] sm:$0xff] %vm476, %v1778
    %1841 = vst.msk [vmem:[#allocation3 + $0x18] sm:$0xff] %vm476, %v1779
    %1842 = vst.msk [vmem:[#allocation4] sm:$0xff] %vm476, %v1788
    %1843 = vst.msk [vmem:[#allocation4 + $0x8] sm:$0xff] %vm476, %v1789
    %1844 = vst.msk [vmem:[#allocation4 + $0x10] sm:$0xff] %vm476, %v1790
    %1845 = vst.msk [vmem:[#allocation4 + $0x18] sm:$0xff] %vm476, %v1791
    %1846 = vst.msk [vmem:[#allocation5] sm:$0xff] %vm476, %v1816
    %1847 = vst.msk [vmem:[#allocation6] sm:$0xff] %vm476, %v1819
    %v1848 = vld [vmem:[#allocation7] sm:$0xff]
    %v1849 = vld [vmem:[#allocation7 + $0x8] sm:$0xff]
    %v1850 = vld [vmem:[#allocation7 + $0x10] sm:$0xff]
    %v1851 = vld [vmem:[#allocation7 + $0x18] sm:$0xff]
    %v1852 = vld [vmem:[#allocation7 + $0x20] sm:$0xff]
    %v1853 = vld [vmem:[#allocation7 + $0x28] sm:$0xff]
    %v1854 = vld [vmem:[#allocation7 + $0x30] sm:$0xff]
    %v1855 = vld [vmem:[#allocation7 + $0x38] sm:$0xff]
    %vm1856 = vcmask 62464
    %v1857 = vsel %vm1856, %v1848, -inf
    %v1858 = vrot.slane %v1857, 4
    %v1859 = vmax.f32 %v1857, %v1858
    %v1860 = vrot.slane %v1859, 2
    %v1861 = vmax.f32 %v1859, %v1860
    %v1862 = vrot.slane %v1861, 1
    %v1863 = vmax.f32 %v1861, %v1862
    %v1864 = vsel %vm1856, %v1849, -inf
    %v1865 = vrot.slane %v1864, 4
    %v1866 = vmax.f32 %v1864, %v1865
    %v1867 = vrot.slane %v1866, 2
    %v1868 = vmax.f32 %v1866, %v1867
    %v1869 = vrot.slane %v1868, 1
    %v1870 = vmax.f32 %v1868, %v1869
    %v1871 = vsel %vm1856, %v1850, -inf
    %v1872 = vrot.slane %v1871, 4
    %v1873 = vmax.f32 %v1871, %v1872
    %v1874 = vrot.slane %v1873, 2
    %v1875 = vmax.f32 %v1873, %v1874
    %v1876 = vrot.slane %v1875, 1
    %v1877 = vmax.f32 %v1875, %v1876
    %v1878 = vsel %vm1856, %v1851, -inf
    %v1879 = vrot.slane %v1878, 4
    %v1880 = vmax.f32 %v1878, %v1879
    %v1881 = vrot.slane %v1880, 2
    %v1882 = vmax.f32 %v1880, %v1881
    %v1883 = vrot.slane %v1882, 1
    %v1884 = vmax.f32 %v1882, %v1883
    %v1885 = vsel %vm1856, %v1852, -inf
    %v1886 = vrot.slane %v1885, 4
    %v1887 = vmax.f32 %v1885, %v1886
    %v1888 = vrot.slane %v1887, 2
    %v1889 = vmax.f32 %v1887, %v1888
    %v1890 = vrot.slane %v1889, 1
    %v1891 = vmax.f32 %v1889, %v1890
    %v1892 = vsel %vm1856, %v1853, -inf
    %v1893 = vrot.slane %v1892, 4
    %v1894 = vmax.f32 %v1892, %v1893
    %v1895 = vrot.slane %v1894, 2
    %v1896 = vmax.f32 %v1894, %v1895
    %v1897 = vrot.slane %v1896, 1
    %v1898 = vmax.f32 %v1896, %v1897
    %v1899 = vsel %vm1856, %v1854, -inf
    %v1900 = vrot.slane %v1899, 4
    %v1901 = vmax.f32 %v1899, %v1900
    %v1902 = vrot.slane %v1901, 2
    %v1903 = vmax.f32 %v1901, %v1902
    %v1904 = vrot.slane %v1903, 1
    %v1905 = vmax.f32 %v1903, %v1904
    %v1906 = vsel %vm1856, %v1855, -inf
    %v1907 = vrot.slane %v1906, 4
    %v1908 = vmax.f32 %v1906, %v1907
    %v1909 = vrot.slane %v1908, 2
    %v1910 = vmax.f32 %v1908, %v1909
    %v1911 = vrot.slane %v1910, 1
    %v1912 = vmax.f32 %v1910, %v1911
    %v1913 = vsub.f32 %v1848, %v1863
    %v1914 = vsub.f32 %v1849, %v1870
    %v1915 = vsub.f32 %v1850, %v1877
    %v1916 = vsub.f32 %v1851, %v1884
    %v1917 = vsub.f32 %v1852, %v1891
    %v1918 = vsub.f32 %v1853, %v1898
    %v1919 = vsub.f32 %v1854, %v1905
    %v1920 = vsub.f32 %v1855, %v1912
    %v1921 = vmul.f32 %v1913, 1.442695
    %v1922 = vpow.pop %v1921
    %v1923 = vmul.f32 %v1914, 1.442695
    %v1924 = vpow.pop %v1923
    %v1925 = vmul.f32 %v1915, 1.442695
    %v1926 = vpow.pop %v1925
    %v1927 = vmul.f32 %v1916, 1.442695
    %v1928 = vpow.pop %v1927
    %v1929 = vmul.f32 %v1917, 1.442695
    %v1930 = vpow.pop %v1929
    %v1931 = vmul.f32 %v1918, 1.442695
    %v1932 = vpow.pop %v1931
    %v1933 = vmul.f32 %v1919, 1.442695
    %v1934 = vpow.pop %v1933
    %v1935 = vmul.f32 %v1920, 1.442695
    %v1936 = vpow.pop %v1935
    %v1937 = vsel %vm1856, %v1922, 0.0
    %v1938 = vrot.slane %v1937, 4
    %v1939 = vadd.f32 %v1937, %v1938
    %v1940 = vrot.slane %v1939, 2
    %v1941 = vadd.f32 %v1939, %v1940
    %v1942 = vrot.slane %v1941, 1
    %v1943 = vadd.f32 %v1941, %v1942
    %v1944 = vsel %vm1856, %v1924, 0.0
    %v1945 = vrot.slane %v1944, 4
    %v1946 = vadd.f32 %v1944, %v1945
    %v1947 = vrot.slane %v1946, 2
    %v1948 = vadd.f32 %v1946, %v1947
    %v1949 = vrot.slane %v1948, 1
    %v1950 = vadd.f32 %v1948, %v1949
    %v1951 = vsel %vm1856, %v1926, 0.0
    %v1952 = vrot.slane %v1951, 4
    %v1953 = vadd.f32 %v1951, %v1952
    %v1954 = vrot.slane %v1953, 2
    %v1955 = vadd.f32 %v1953, %v1954
    %v1956 = vrot.slane %v1955, 1
    %v1957 = vadd.f32 %v1955, %v1956
    %v1958 = vsel %vm1856, %v1928, 0.0
    %v1959 = vrot.slane %v1958, 4
    %v1960 = vadd.f32 %v1958, %v1959
    %v1961 = vrot.slane %v1960, 2
    %v1962 = vadd.f32 %v1960, %v1961
    %v1963 = vrot.slane %v1962, 1
    %v1964 = vadd.f32 %v1962, %v1963
    %v1965 = vsel %vm1856, %v1930, 0.0
    %v1966 = vrot.slane %v1965, 4
    %v1967 = vadd.f32 %v1965, %v1966
    %v1968 = vrot.slane %v1967, 2
    %v1969 = vadd.f32 %v1967, %v1968
    %v1970 = vrot.slane %v1969, 1
    %v1971 = vadd.f32 %v1969, %v1970
    %v1972 = vsel %vm1856, %v1932, 0.0
    %v1973 = vrot.slane %v1972, 4
    %v1974 = vadd.f32 %v1972, %v1973
    %v1975 = vrot.slane %v1974, 2
    %v1976 = vadd.f32 %v1974, %v1975
    %v1977 = vrot.slane %v1976, 1
    %v1978 = vadd.f32 %v1976, %v1977
    %v1979 = vsel %vm1856, %v1934, 0.0
    %v1980 = vrot.slane %v1979, 4
    %v1981 = vadd.f32 %v1979, %v1980
    %v1982 = vrot.slane %v1981, 2
    %v1983 = vadd.f32 %v1981, %v1982
    %v1984 = vrot.slane %v1983, 1
    %v1985 = vadd.f32 %v1983, %v1984
    %v1986 = vsel %vm1856, %v1936, 0.0
    %v1987 = vrot.slane %v1986, 4
    %v1988 = vadd.f32 %v1986, %v1987
    %v1989 = vrot.slane %v1988, 2
    %v1990 = vadd.f32 %v1988, %v1989
    %v1991 = vrot.slane %v1990, 1
    %v1992 = vadd.f32 %v1990, %v1991
    %v1993 = vlog2.pop %v1943
    %v1994 = vmul.f32 %v1993, 0.6931472
    %v1995 = vlog2.pop %v1950
    %v1996 = vmul.f32 %v1995, 0.6931472
    %v1997 = vlog2.pop %v1957
    %v1998 = vmul.f32 %v1997, 0.6931472
    %v1999 = vlog2.pop %v1964
    %v2000 = vmul.f32 %v1999, 0.6931472
    %v2001 = vlog2.pop %v1971
    %v2002 = vmul.f32 %v2001, 0.6931472
    %v2003 = vlog2.pop %v1978
    %v2004 = vmul.f32 %v2003, 0.6931472
    %v2005 = vlog2.pop %v1985
    %v2006 = vmul.f32 %v2005, 0.6931472
    %v2007 = vlog2.pop %v1992
    %v2008 = vmul.f32 %v2007, 0.6931472
    %v2009 = vadd.f32 %v1863, %v1994
    %v2010 = vadd.f32 %v1870, %v1996
    %v2011 = vadd.f32 %v1877, %v1998
    %v2012 = vadd.f32 %v1884, %v2000
    %v2013 = vadd.f32 %v1891, %v2002
    %v2014 = vadd.f32 %v1898, %v2004
    %v2015 = vadd.f32 %v1905, %v2006
    %v2016 = vadd.f32 %v1912, %v2008
    %v2017 = vsub.f32 %v1848, %v2009
    %v2018 = vsub.f32 %v1849, %v2010
    %v2019 = vsub.f32 %v1850, %v2011
    %v2020 = vsub.f32 %v1851, %v2012
    %v2021 = vsub.f32 %v1852, %v2013
    %v2022 = vsub.f32 %v1853, %v2014
    %v2023 = vsub.f32 %v1854, %v2015
    %v2024 = vsub.f32 %v1855, %v2016
    %2025 = vst.msk [vmem:[#allocation7] sm:$0xff] %vm476, %v2017
    %2026 = vst.msk [vmem:[#allocation7 + $0x8] sm:$0xff] %vm476, %v2018
    %2027 = vst.msk [vmem:[#allocation7 + $0x10] sm:$0xff] %vm476, %v2019
    %2028 = vst.msk [vmem:[#allocation7 + $0x18] sm:$0xff] %vm476, %v2020
    %2029 = vst.msk [vmem:[#allocation7 + $0x20] sm:$0xff] %vm476, %v2021
    %2030 = vst.msk [vmem:[#allocation7 + $0x28] sm:$0xff] %vm476, %v2022
    %2031 = vst.msk [vmem:[#allocation7 + $0x30] sm:$0xff] %vm476, %v2023
    %2032 = vst.msk [vmem:[#allocation7 + $0x38] sm:$0xff] %vm476, %v2024
    // Predicated region
    $region34: #{tpu_custom_call.1} parent=1 // pred_check
      _
    $region35: #{tpu_custom_call.1} parent=1 // pred_check_branch
      %2034 = sbr.rel (0) target = $region37
    $region36: #{tpu_custom_call.1} parent=1 // pred_region
      %2036 = vsyncadd [#allocation8], 0
      %s2037 = sshll.u32 [#allocation7], 4
      %s2038 = int_to_ptr.vmem [resolvable:$true] %s2037
      %s2039 = sshll.u32 %s7, 4
      %s2040 = int_to_ptr.hbm [resolvable:$true] %s2039
      %2045 = dma.vmem_to_hbm [thread:$0]  %s2038, 1024, %s2040, [#allocation8], 128, 128, 8
    $region37: #{tpu_custom_call.1} parent=1 // pred_fallthru
      _
    // Predicated region
    $region38: #{tpu_custom_call.1} parent=1 // pred_check
      _
    $region39: #{tpu_custom_call.1} parent=1 // pred_check_branch
      %2047 = sbr.rel (0) target = $region41
    $region40: #{tpu_custom_call.1} parent=1 // pred_region
      %2049 = dma.done [#allocation8], 1024
    $region41: #{tpu_custom_call.1} parent=1 // pred_fallthru
      _
    %2050 = vsyncpa [#allocation8], 1

</llo_original>
